<compile_context>
chip_gen: v7x
topology: tpu7x:2x2x1
jax: 0.10.0
libtpu: 0.0.40
codegen_flags: <defaults>
</compile_context>

<pallas_src>
import jax
import jax.numpy as jnp
from jax.experimental import pallas as pl
from jax.experimental.pallas import tpu as pltpu

INPUT_SIZE = 1024
H1 = 256
H2 = 256
H3 = 256


def _round_up(x, m):
    return ((x + m - 1) // m) * m


def _choose_tile(B, tm_max=1024):
    """Batch tile selection: a multiple of 256 (MXU edge) that divides the
    sublane-padded batch when possible (no jnp.pad copy) and keeps the grid at
    >= 2 steps for B >= 512 so both v7x TensorCores get work.  Small batches use a
    single sublane-padded tile."""
    B8 = _round_up(B, 8)
    if B8 < 512:
        return B8, B8
    cap = min(tm_max, B8 // 2)            # grid >= 2
    cap = max(256, (cap // 256) * 256)    # MXU-edge multiple
    for tm in range(cap, 255, -256):      # largest multiple of 256 dividing B8
        if B8 % tm == 0:
            return tm, B8
    return cap, _round_up(B8, cap)        # ragged batch -> pad to the tile


def liponet_kernel(x_ref, w1_ref, b1_ref, w2_ref, b2_ref, w3_ref, b3_ref,
                   w4_ref, b4_ref, o_ref):
    # Hoist grid-invariant small reads.
    b1 = b1_ref[...]
    b2 = b2_ref[...]
    b3 = b3_ref[...]
    b4 = b4_ref[...]            # (1, 1) f32
    w4 = w4_ref[...]            # (1, H3) f32 row of the size-1 head

    # fc1 + relu: x cast to bf16 in-kernel (MXU inputs), f32 accumulation.
    xb = x_ref[...].astype(jnp.bfloat16)
    h = jnp.dot(xb, w1_ref[...], preferred_element_type=jnp.float32)
    h = jnp.maximum(h + b1, 0.0)
    # fc2_a + relu
    h = jnp.dot(h.astype(jnp.bfloat16), w2_ref[...],
                preferred_element_type=jnp.float32)
    h = jnp.maximum(h + b2, 0.0)
    # fc2_b + relu
    h = jnp.dot(h.astype(jnp.bfloat16), w3_ref[...],
                preferred_element_type=jnp.float32)
    h = jnp.maximum(h + b3, 0.0)
    # fc2 head (H3 -> 1): VPU multiply + lane reduction in f32 (keeps the 127/128-zero
    # padded matmul off the MXU; output stays a real (tm, 1) column).
    o = jnp.sum(h * w4, axis=-1, keepdims=True) + b4
    o_ref[...] = o.astype(o_ref.dtype)


def liponet_forward(x, params, *, tm_max=1024):
    """x: (B, 1024) float32 or bfloat16.  Returns (B, 1) float32."""
    w1, b1, w2, b2, w3, b3, w4_row, b4 = params
    B = x.shape[0]

    tm_eff, B_pad = _choose_tile(B, tm_max)
    if B_pad != B:
        # Only taken for ragged batches no tile divides; demo shapes avoid it.
        x = jnp.pad(x, ((0, B_pad - B), (0, 0)))
    grid = (B_pad // tm_eff,)

    flops = 2 * B_pad * (INPUT_SIZE * H1 + H1 * H2 + H2 * H3 + H3)
    bytes_accessed = (
        x.size * x.dtype.itemsize                                   # activations in
        + (w1.size + w2.size + w3.size) * 2                         # bf16 weights
        + (b1.size + b2.size + b3.size + w4_row.size + b4.size) * 4  # f32 smalls
        + B_pad * 4)                                                # (B, 1) f32 out
    # x double-buffer dominates VMEM; 16 MiB headroom covers resident weights +
    # layer intermediates.  Stays under every generation's scoped/physical budget.
    vmem_limit = int(min(2 * tm_eff * INPUT_SIZE * x.dtype.itemsize + (16 << 20),
                         64 << 20))

    out = pl.pallas_call(
        liponet_kernel,
        out_shape=jax.ShapeDtypeStruct((B_pad, 1), jnp.float32),
        grid_spec=pltpu.PrefetchScalarGridSpec(
            num_scalar_prefetch=0,
            grid=grid,
            in_specs=[
                pl.BlockSpec((tm_eff, INPUT_SIZE), lambda i: (i, 0)),   # x tile (grid-varying)
                pl.BlockSpec((INPUT_SIZE, H1),     lambda i: (0, 0)),   # W1 (resident)
                pl.BlockSpec((1, H1),              lambda i: (0, 0)),   # b1
                pl.BlockSpec((H1, H2),             lambda i: (0, 0)),   # W2
                pl.BlockSpec((1, H2),              lambda i: (0, 0)),   # b2
                pl.BlockSpec((H2, H3),             lambda i: (0, 0)),   # W3
                pl.BlockSpec((1, H3),              lambda i: (0, 0)),   # b3
                pl.BlockSpec((1, H3),              lambda i: (0, 0)),   # w4 row (f32)
                pl.BlockSpec((1, 1),               lambda i: (0, 0)),   # b4
            ],
            out_specs=pl.BlockSpec((tm_eff, 1), lambda i: (i, 0)),
        ),
        compiler_params=pltpu.CompilerParams(
            dimension_semantics=("parallel",),
            vmem_limit_bytes=vmem_limit),
        cost_estimate=pl.CostEstimate(
            flops=flops, transcendentals=0, bytes_accessed=bytes_accessed),
    )(x, w1, b1, w2, b2, w3, b3, w4_row, b4)

    return out if B_pad == B else out[:B]


def init_params(key):
    """PyTorch nn.Linear-style init: U(-1/sqrt(fan_in), 1/sqrt(fan_in)).
    Hidden-layer weights stored [in, out] and cast to bf16 once here (MXU inputs);
    the size-1 head is kept as an f32 (1, H3) row for the in-kernel VPU row-dot."""
    def linear(k, fan_in, fan_out):
        kw, kb = jax.random.split(k)
        bound = 1.0 / jnp.sqrt(fan_in)
        w = jax.random.uniform(kw, (fan_in, fan_out), jnp.float32, -bound, bound)
        b = jax.random.uniform(kb, (1, fan_out), jnp.float32, -bound, bound)
        return w, b

    k1, k2, k3, k4 = jax.random.split(key, 4)
    w1, b1 = linear(k1, INPUT_SIZE, H1)
    w2, b2 = linear(k2, H1, H2)
    w3, b3 = linear(k3, H2, H3)
    w4, b4 = linear(k4, H3, 1)

    return (w1.astype(jnp.bfloat16), b1,
            w2.astype(jnp.bfloat16), b2,
            w3.astype(jnp.bfloat16), b3,
            w4.T,                       # (1, H3) f32 head row
            b4)                         # (1, 1) f32 head bias


def reference_forward(x, params):
    """Pure-JAX reference matching the kernel's numerics: bf16-rounded MXU inputs,
    f32 accumulation, f32 VPU head."""
    w1, b1, w2, b2, w3, b3, w4_row, b4 = params
    hi = jax.lax.Precision.HIGHEST

    def f32(a):
        return a.astype(jnp.float32)

    h = f32(x.astype(jnp.bfloat16))
    h = jnp.maximum(jnp.dot(h, f32(w1), precision=hi) + b1, 0.0)
    h = f32(h.astype(jnp.bfloat16))
    h = jnp.maximum(jnp.dot(h, f32(w2), precision=hi) + b2, 0.0)
    h = f32(h.astype(jnp.bfloat16))
    h = jnp.maximum(jnp.dot(h, f32(w3), precision=hi) + b3, 0.0)
    return jnp.sum(h * w4_row, axis=-1, keepdims=True) + b4


if __name__ == "__main__":
    key = jax.random.PRNGKey(0)
    k_param, k_x = jax.random.split(key)
    params = init_params(k_param)

    # Small demo batch: single tile, no padding.
    x_small = jax.random.normal(k_x, (16, INPUT_SIZE), jnp.float32)
    out_small = jax.block_until_ready(liponet_forward(x_small, params))
    ref_small = reference_forward(x_small, params)
    assert out_small.shape == (16, 1), out_small.shape
    assert jnp.allclose(out_small, ref_small, atol=2e-3, rtol=2e-3), (
        float(jnp.max(jnp.abs(out_small - ref_small))))

    # Multi-step grid path: 2 x 256-row tiles (one per v7x TensorCore), no padding.
    x_big = jax.random.normal(k_x, (512, INPUT_SIZE), jnp.float32)
    out_big = jax.block_until_ready(liponet_forward(x_big, params))
    ref_big = reference_forward(x_big, params)
    assert out_big.shape == (512, 1), out_big.shape
    assert jnp.allclose(out_big, ref_big, atol=2e-3, rtol=2e-3), (
        float(jnp.max(jnp.abs(out_big - ref_big))))

    print("KERNEL_OK")
</pallas_src>

<mosaic_0001>
module attributes {stable_mosaic.version = 11 : i64} {
  func.func @liponet_kernel(%arg0: i32, %arg1: memref<16x1024xf32, #tpu.memory_space<vmem>>, %arg2: memref<1024x256xbf16, #tpu.memory_space<vmem>>, %arg3: memref<1x256xf32, #tpu.memory_space<vmem>>, %arg4: memref<256x256xbf16, #tpu.memory_space<vmem>>, %arg5: memref<1x256xf32, #tpu.memory_space<vmem>>, %arg6: memref<256x256xbf16, #tpu.memory_space<vmem>>, %arg7: memref<1x256xf32, #tpu.memory_space<vmem>>, %arg8: memref<1x256xf32, #tpu.memory_space<vmem>>, %arg9: memref<1x1xf32, #tpu.memory_space<vmem>>, %arg10: memref<16x1xf32, #tpu.memory_space<vmem>>) attributes {dimension_semantics = [#tpu.dimension_semantics<parallel>], iteration_bounds = array<i64: 1>, scalar_prefetch = 0 : i64, scratch_operands = 0 : i64, tpu.core_type = #tpu.core_type<tc>, window_params = [{transform_indices = @transform_0, window_bounds = array<i64: 16, 1024>}, {pipeline_mode = #tpu.pipeline_mode<synchronous>, transform_indices = @transform_1, window_bounds = array<i64: 1024, 256>}, {pipeline_mode = #tpu.pipeline_mode<synchronous>, transform_indices = @transform_2, window_bounds = array<i64: 1, 256>}, {pipeline_mode = #tpu.pipeline_mode<synchronous>, transform_indices = @transform_3, window_bounds = array<i64: 256, 256>}, {pipeline_mode = #tpu.pipeline_mode<synchronous>, transform_indices = @transform_4, window_bounds = array<i64: 1, 256>}, {pipeline_mode = #tpu.pipeline_mode<synchronous>, transform_indices = @transform_5, window_bounds = array<i64: 256, 256>}, {pipeline_mode = #tpu.pipeline_mode<synchronous>, transform_indices = @transform_6, window_bounds = array<i64: 1, 256>}, {pipeline_mode = #tpu.pipeline_mode<synchronous>, transform_indices = @transform_7, window_bounds = array<i64: 1, 256>}, {pipeline_mode = #tpu.pipeline_mode<synchronous>, transform_indices = @transform_8, window_bounds = array<i64: 1, 1>}, {transform_indices = @transform_9, window_bounds = array<i64: 16, 1>}]} {
    %c0 = arith.constant 0 : index
    %c0_0 = arith.constant 0 : index
    %0 = vector.load %arg3[%c0, %c0_0] : memref<1x256xf32, #tpu.memory_space<vmem>>, vector<1x256xf32>
    %c0_1 = arith.constant 0 : index
    %c0_2 = arith.constant 0 : index
    %1 = vector.load %arg5[%c0_1, %c0_2] : memref<1x256xf32, #tpu.memory_space<vmem>>, vector<1x256xf32>
    %c0_3 = arith.constant 0 : index
    %c0_4 = arith.constant 0 : index
    %2 = vector.load %arg7[%c0_3, %c0_4] : memref<1x256xf32, #tpu.memory_space<vmem>>, vector<1x256xf32>
    %c0_5 = arith.constant 0 : index
    %c0_6 = arith.constant 0 : index
    %3 = vector.load %arg9[%c0_5, %c0_6] : memref<1x1xf32, #tpu.memory_space<vmem>>, vector<1x1xf32>
    %c0_7 = arith.constant 0 : index
    %c0_8 = arith.constant 0 : index
    %4 = vector.load %arg8[%c0_7, %c0_8] : memref<1x256xf32, #tpu.memory_space<vmem>>, vector<1x256xf32>
    %c0_9 = arith.constant 0 : index
    %c0_10 = arith.constant 0 : index
    %5 = vector.load %arg1[%c0_9, %c0_10] : memref<16x1024xf32, #tpu.memory_space<vmem>>, vector<16x1024xf32>
    %6 = arith.truncf %5 : vector<16x1024xf32> to vector<16x1024xbf16>
    %c0_11 = arith.constant 0 : index
    %c0_12 = arith.constant 0 : index
    %7 = vector.load %arg2[%c0_11, %c0_12] : memref<1024x256xbf16, #tpu.memory_space<vmem>>, vector<1024x256xbf16>
    %cst = arith.constant dense<0.000000e+00> : vector<16x256xf32>
    %8 = tpu.matmul %6, %7, %cst {dimension_numbers = #tpu.dot_dimension_numbers<[1], [0], [0], [1], [0, 0, 1, 1], [], []>} : vector<16x1024xbf16>, vector<1024x256xbf16>, vector<16x256xf32> -> vector<16x256xf32>
    %9 = vector.broadcast %0 : vector<1x256xf32> to vector<16x256xf32>
    %10 = arith.addf %8, %9 : vector<16x256xf32>
    %cst_13 = arith.constant 0.000000e+00 : f32
    %11 = vector.broadcast %cst_13 : f32 to vector<16x256xf32>
    %12 = arith.maximumf %10, %11 : vector<16x256xf32>
    %13 = arith.truncf %12 : vector<16x256xf32> to vector<16x256xbf16>
    %c0_14 = arith.constant 0 : index
    %c0_15 = arith.constant 0 : index
    %14 = vector.load %arg4[%c0_14, %c0_15] : memref<256x256xbf16, #tpu.memory_space<vmem>>, vector<256x256xbf16>
    %cst_16 = arith.constant dense<0.000000e+00> : vector<16x256xf32>
    %15 = tpu.matmul %13, %14, %cst_16 {dimension_numbers = #tpu.dot_dimension_numbers<[1], [0], [0], [1], [0, 0, 1, 1], [], []>} : vector<16x256xbf16>, vector<256x256xbf16>, vector<16x256xf32> -> vector<16x256xf32>
    %16 = vector.broadcast %1 : vector<1x256xf32> to vector<16x256xf32>
    %17 = arith.addf %15, %16 : vector<16x256xf32>
    %cst_17 = arith.constant 0.000000e+00 : f32
    %18 = vector.broadcast %cst_17 : f32 to vector<16x256xf32>
    %19 = arith.maximumf %17, %18 : vector<16x256xf32>
    %20 = arith.truncf %19 : vector<16x256xf32> to vector<16x256xbf16>
    %c0_18 = arith.constant 0 : index
    %c0_19 = arith.constant 0 : index
    %21 = vector.load %arg6[%c0_18, %c0_19] : memref<256x256xbf16, #tpu.memory_space<vmem>>, vector<256x256xbf16>
    %cst_20 = arith.constant dense<0.000000e+00> : vector<16x256xf32>
    %22 = tpu.matmul %20, %21, %cst_20 {dimension_numbers = #tpu.dot_dimension_numbers<[1], [0], [0], [1], [0, 0, 1, 1], [], []>} : vector<16x256xbf16>, vector<256x256xbf16>, vector<16x256xf32> -> vector<16x256xf32>
    %23 = vector.broadcast %2 : vector<1x256xf32> to vector<16x256xf32>
    %24 = arith.addf %22, %23 : vector<16x256xf32>
    %cst_21 = arith.constant 0.000000e+00 : f32
    %25 = vector.broadcast %cst_21 : f32 to vector<16x256xf32>
    %26 = arith.maximumf %24, %25 : vector<16x256xf32>
    %27 = vector.broadcast %4 : vector<1x256xf32> to vector<16x256xf32>
    %28 = arith.mulf %26, %27 : vector<16x256xf32>
    %cst_22 = arith.constant dense<0.000000e+00> : vector<16xf32>
    %29 = vector.multi_reduction <add>, %28, %cst_22 [1] : vector<16x256xf32> to vector<16xf32>
    %30 = vector.shape_cast %29 : vector<16xf32> to vector<16x1xf32>
    %31 = vector.broadcast %3 : vector<1x1xf32> to vector<16x1xf32>
    %32 = arith.addf %30, %31 : vector<16x1xf32>
    %c0_23 = arith.constant 0 : index
    %c0_24 = arith.constant 0 : index
    %33 = vector.load %arg10[%c0_23, %c0_24] : memref<16x1xf32, #tpu.memory_space<vmem>>, vector<16x1xf32>
    tpu.vector_store %arg10[%c0_23, %c0_24], %32 {strides = array<i32>} : memref<16x1xf32, #tpu.memory_space<vmem>>, vector<16x1xf32>,
    return
  }
  func.func @transform_0(%arg0: i32) -> (i32, i32) {
    %c0_i32 = arith.constant 0 : i32
    %c0_i32_0 = arith.constant 0 : i32
    return %arg0, %c0_i32 : i32, i32
  }
  func.func @transform_1(%arg0: i32) -> (i32, i32) {
    %c0_i32 = arith.constant 0 : i32
    %c0_i32_0 = arith.constant 0 : i32
    %c0_i32_1 = arith.constant 0 : i32
    return %c0_i32, %c0_i32_0 : i32, i32
  }
  func.func @transform_2(%arg0: i32) -> (i32, i32) {
    %c0_i32 = arith.constant 0 : i32
    %c0_i32_0 = arith.constant 0 : i32
    %c0_i32_1 = arith.constant 0 : i32
    return %c0_i32, %c0_i32_0 : i32, i32
  }
  func.func @transform_3(%arg0: i32) -> (i32, i32) {
    %c0_i32 = arith.constant 0 : i32
    %c0_i32_0 = arith.constant 0 : i32
    %c0_i32_1 = arith.constant 0 : i32
    return %c0_i32, %c0_i32_0 : i32, i32
  }
  func.func @transform_4(%arg0: i32) -> (i32, i32) {
    %c0_i32 = arith.constant 0 : i32
    %c0_i32_0 = arith.constant 0 : i32
    %c0_i32_1 = arith.constant 0 : i32
    return %c0_i32, %c0_i32_0 : i32, i32
  }
  func.func @transform_5(%arg0: i32) -> (i32, i32) {
    %c0_i32 = arith.constant 0 : i32
    %c0_i32_0 = arith.constant 0 : i32
    %c0_i32_1 = arith.constant 0 : i32
    return %c0_i32, %c0_i32_0 : i32, i32
  }
  func.func @transform_6(%arg0: i32) -> (i32, i32) {
    %c0_i32 = arith.constant 0 : i32
    %c0_i32_0 = arith.constant 0 : i32
    %c0_i32_1 = arith.constant 0 : i32
    return %c0_i32, %c0_i32_0 : i32, i32
  }
  func.func @transform_7(%arg0: i32) -> (i32, i32) {
    %c0_i32 = arith.constant 0 : i32
    %c0_i32_0 = arith.constant 0 : i32
    %c0_i32_1 = arith.constant 0 : i32
    return %c0_i32, %c0_i32_0 : i32, i32
  }
  func.func @transform_8(%arg0: i32) -> (i32, i32) {
    %c0_i32 = arith.constant 0 : i32
    %c0_i32_0 = arith.constant 0 : i32
    %c0_i32_1 = arith.constant 0 : i32
    return %c0_i32, %c0_i32_0 : i32, i32
  }
  func.func @transform_9(%arg0: i32) -> (i32, i32) {
    %c0_i32 = arith.constant 0 : i32
    %c0_i32_0 = arith.constant 0 : i32
    return %arg0, %c0_i32 : i32, i32
  }
}

</mosaic_0001>

<llo_original>
// kernel: tpu_custom_call.1
$region0: #{tpu_custom_call.1}
  #allocation0 [shape = 'u32[]', space=smem, size = 0x4, offset = 0x4, fixed_abs, tag = 'smem constant byte address 0x4 - core index']
  #allocation1 [shape = 'u32[144,128]{1,0:T(1,128)}', space=vmem, size = 0x12000, scoped, tag = 'internal scratch']
  #allocation2 [shape = 'f32[1,1]{1,0:T(1,128)S(1)}', space=vmem, size = 0x200, scoped, tag = 'scoped memory for tpu_custom_call.1']
  %s0 = inlined_call_operand.hbm [shape: f32[16,1024], index: 0, kind: input, shape index: {}]
  %s1 = inlined_call_operand.hbm [shape: bf16[1024,256], index: 1, kind: input, shape index: {}]
  %s2 = inlined_call_operand.vmem [shape: f32[1,256], index: 2, kind: input, shape index: {}]
  %s3 = inlined_call_operand.hbm [shape: bf16[256,256], index: 3, kind: input, shape index: {}]
  %s4 = inlined_call_operand.vmem [shape: f32[1,256], index: 4, kind: input, shape index: {}]
  %s5 = inlined_call_operand.hbm [shape: bf16[256,256], index: 5, kind: input, shape index: {}]
  %s6 = inlined_call_operand.vmem [shape: f32[1,256], index: 6, kind: input, shape index: {}]
  %s7 = inlined_call_operand.vmem [shape: f32[1,256], index: 7, kind: input, shape index: {}]
  %s8 = inlined_call_operand.<no memory space> [shape: f32[1,1], index: 8, kind: input, shape index: {}]
  %s9 = inlined_call_operand.vmem [shape: f32[16,1], index: 9, kind: output, shape index: {}]
  %s10 = sld [smem:[#allocation0]]
  $region62: #{tpu_custom_call.1} parent=0
    _
  %s12 = ssub.s32 1, %s10
  %s13 = scalar_select 0, %s12, %s10
  %v14 = vstv %s8
  %15 = vst [vmem:[#allocation2] sm:$0x1] %v14
  $region1: #{tpu_custom_call.1} parent=0
    #allocation3 [shape = 'u8[65536]{0}', space=vmem, size = 0x10000, scoped, tag = 'input window, operand 0, single buffered']
    #allocation4 [shape = 's32[1]{0}', space=sflag, size = 0x4, scoped, tag = 'scoped memory for tpu_custom_call.1']
    #allocation5 [shape = 'u8[524288]{0}', space=vmem, size = 0x80000, scoped, tag = 'input window, operand 1, single buffered']
    #allocation6 [shape = 's32[1]{0}', space=sflag, size = 0x4, scoped, tag = 'scoped memory for tpu_custom_call.1']
    #allocation7 [shape = 'u8[131072]{0}', space=vmem, size = 0x20000, scoped, tag = 'input window, operand 3, single buffered']
    #allocation8 [shape = 'u8[131072]{0}', space=vmem, size = 0x20000, scoped, tag = 'input window, operand 5, single buffered']
    #allocation9 [shape = 's32[1]{0}', space=sflag, size = 0x4, scoped, tag = 'scoped memory for tpu_custom_call.1']
    %16 = vsyncpa [#allocation4], 0
    %17 = vsyncpa [#allocation6], 0
    %18 = vsyncpa [#allocation9], 0
    // Predicated region
    $region2: #{tpu_custom_call.1} parent=1 // pred_check
      _
    $region3: #{tpu_custom_call.1} parent=1 // pred_check_branch
      %20 = sbr.rel (0) target = $region5
    $region4: #{tpu_custom_call.1} parent=1 // pred_region
      %s22 = ssub.s32 2048, 2048
      %23 = vsyncadd [#allocation4], %s22
      %s24 = sshll.u32 [#allocation3], 4
      %s25 = int_to_ptr.vmem [resolvable:$true] %s24
      %30 = dma.hbm_to_vmem [thread:$0]  %s0, 2048, %s25, [#allocation4], 1024, 1024, 64
    $region5: #{tpu_custom_call.1} parent=1 // pred_fallthru
      _
    // Predicated region
    $region6: #{tpu_custom_call.1} parent=1 // pred_check
      _
    $region7: #{tpu_custom_call.1} parent=1 // pred_check_branch
      %32 = sbr.rel (0) target = $region9
    $region8: #{tpu_custom_call.1} parent=1 // pred_region
      %s34 = ssub.s32 16384, 16384
      %35 = vsyncadd [#allocation6], %s34
      %s36 = sshll.u32 [#allocation5], 4
      %s37 = int_to_ptr.vmem [resolvable:$true] %s36
      %42 = dma.hbm_to_vmem [thread:$0]  %s1, 16384, %s37, [#allocation6], 128, 128, 8
    $region9: #{tpu_custom_call.1} parent=1 // pred_fallthru
      _
    // Predicated region
    $region10: #{tpu_custom_call.1} parent=1 // pred_check
      _
    $region11: #{tpu_custom_call.1} parent=1 // pred_check_branch
      %44 = sbr.rel (0) target = $region13
    $region12: #{tpu_custom_call.1} parent=1 // pred_region
      _
    $region13: #{tpu_custom_call.1} parent=1 // pred_fallthru
      _
    // Predicated region
    $region14: #{tpu_custom_call.1} parent=1 // pred_check
      _
    $region15: #{tpu_custom_call.1} parent=1 // pred_check_branch
      %46 = sbr.rel (0) target = $region17
    $region16: #{tpu_custom_call.1} parent=1 // pred_region
      %s48 = ssub.s32 4096, 4096
      %49 = vsyncadd [#allocation6], %s48
      %s50 = sshll.u32 [#allocation7], 4
      %s51 = int_to_ptr.vmem [resolvable:$true] %s50
      %56 = dma.hbm_to_vmem [thread:$0]  %s3, 4096, %s51, [#allocation6], 128, 128, 8
    $region17: #{tpu_custom_call.1} parent=1 // pred_fallthru
      _
    // Predicated region
    $region18: #{tpu_custom_call.1} parent=1 // pred_check
      _
    $region19: #{tpu_custom_call.1} parent=1 // pred_check_branch
      %58 = sbr.rel (0) target = $region21
    $region20: #{tpu_custom_call.1} parent=1 // pred_region
      _
    $region21: #{tpu_custom_call.1} parent=1 // pred_fallthru
      _
    // Predicated region
    $region22: #{tpu_custom_call.1} parent=1 // pred_check
      _
    $region23: #{tpu_custom_call.1} parent=1 // pred_check_branch
      %60 = sbr.rel (0) target = $region25
    $region24: #{tpu_custom_call.1} parent=1 // pred_region
      %s62 = ssub.s32 4096, 4096
      %63 = vsyncadd [#allocation9], %s62
      %s64 = sshll.u32 [#allocation8], 4
      %s65 = int_to_ptr.vmem [resolvable:$true] %s64
      %70 = dma.hbm_to_vmem [thread:$0]  %s5, 4096, %s65, [#allocation9], 128, 128, 8
    $region25: #{tpu_custom_call.1} parent=1 // pred_fallthru
      _
    // Predicated region
    $region26: #{tpu_custom_call.1} parent=1 // pred_check
      _
    $region27: #{tpu_custom_call.1} parent=1 // pred_check_branch
      %72 = sbr.rel (0) target = $region29
    $region28: #{tpu_custom_call.1} parent=1 // pred_region
      _
    $region29: #{tpu_custom_call.1} parent=1 // pred_fallthru
      _
    // Predicated region
    $region30: #{tpu_custom_call.1} parent=1 // pred_check
      _
    $region31: #{tpu_custom_call.1} parent=1 // pred_check_branch
      %74 = sbr.rel (0) target = $region33
    $region32: #{tpu_custom_call.1} parent=1 // pred_region
      _
    $region33: #{tpu_custom_call.1} parent=1 // pred_fallthru
      _
    // Predicated region
    $region34: #{tpu_custom_call.1} parent=1 // pred_check
      _
    $region35: #{tpu_custom_call.1} parent=1 // pred_check_branch
      %76 = sbr.rel (0) target = $region37
    $region36: #{tpu_custom_call.1} parent=1 // pred_region
      _
    $region37: #{tpu_custom_call.1} parent=1 // pred_fallthru
      _
    // Predicated region
    $region38: #{tpu_custom_call.1} parent=1 // pred_check
      _
    $region39: #{tpu_custom_call.1} parent=1 // pred_check_branch
      %78 = sbr.rel (0) target = $region41
    $region40: #{tpu_custom_call.1} parent=1 // pred_region
      %79 = dma.done [#allocation4], 2048
    $region41: #{tpu_custom_call.1} parent=1 // pred_fallthru
      _
    // Predicated region
    $region42: #{tpu_custom_call.1} parent=1 // pred_check
      _
    $region43: #{tpu_custom_call.1} parent=1 // pred_check_branch
      %81 = sbr.rel (0) target = $region45
    $region44: #{tpu_custom_call.1} parent=1 // pred_region
      %82 = dma.done [#allocation6], 16384
    $region45: #{tpu_custom_call.1} parent=1 // pred_fallthru
      _
    // Predicated region
    $region46: #{tpu_custom_call.1} parent=1 // pred_check
      _
    $region47: #{tpu_custom_call.1} parent=1 // pred_check_branch
      %84 = sbr.rel (0) target = $region49
    $region48: #{tpu_custom_call.1} parent=1 // pred_region
      %85 = dma.done [#allocation6], 4096
    $region49: #{tpu_custom_call.1} parent=1 // pred_fallthru
      _
    // Predicated region
    $region50: #{tpu_custom_call.1} parent=1 // pred_check
      _
    $region51: #{tpu_custom_call.1} parent=1 // pred_check_branch
      %87 = sbr.rel (0) target = $region53
    $region52: #{tpu_custom_call.1} parent=1 // pred_region
      %88 = dma.done [#allocation9], 4096
    $region53: #{tpu_custom_call.1} parent=1 // pred_fallthru
      _
    %v89 = vld [vmem:[%s2] sm:$0x3]
    %v90 = vld [vmem:[%s4] sm:$0x3]
    %v91 = vld [vmem:[%s6] sm:$0x3]
    %v92 = vld [vmem:[#allocation2] sm:$0x1]
    %v93 = vld [vmem:[%s7] sm:$0x3]
    %v94 = vld [vmem:[#allocation3] sm:$0xff]
    %v95 = vld [vmem:[#allocation3 + $0x8] sm:$0xff]
    %v96 = vld [vmem:[#allocation3 + $0x10] sm:$0xff]
    %v97 = vld [vmem:[#allocation3 + $0x18] sm:$0xff]
    %v98 = vld [vmem:[#allocation3 + $0x20] sm:$0xff]
    %v99 = vld [vmem:[#allocation3 + $0x28] sm:$0xff]
    %v100 = vld [vmem:[#allocation3 + $0x30] sm:$0xff]
    %v101 = vld [vmem:[#allocation3 + $0x38] sm:$0xff]
    %v102 = vld [vmem:[#allocation3 + $0x40] sm:$0xff]
    %v103 = vld [vmem:[#allocation3 + $0x48] sm:$0xff]
    %v104 = vld [vmem:[#allocation3 + $0x50] sm:$0xff]
    %v105 = vld [vmem:[#allocation3 + $0x58] sm:$0xff]
    %v106 = vld [vmem:[#allocation3 + $0x60] sm:$0xff]
    %v107 = vld [vmem:[#allocation3 + $0x68] sm:$0xff]
    %v108 = vld [vmem:[#allocation3 + $0x70] sm:$0xff]
    %v109 = vld [vmem:[#allocation3 + $0x78] sm:$0xff]
    %v110 = vpack.c.bf16 %v102, %v94
    %v111 = vpack.c.bf16 %v103, %v95
    %v112 = vpack.c.bf16 %v104, %v96
    %v113 = vpack.c.bf16 %v105, %v97
    %v114 = vpack.c.bf16 %v106, %v98
    %v115 = vpack.c.bf16 %v107, %v99
    %v116 = vpack.c.bf16 %v108, %v100
    %v117 = vpack.c.bf16 %v109, %v101
    %v118 = vld [vmem:[#allocation5] sm:$0xff]
    %v119 = vld [vmem:[#allocation5 + $0x8] sm:$0xff]
    %v120 = vld [vmem:[#allocation5 + $0x10] sm:$0xff]
    %v121 = vld [vmem:[#allocation5 + $0x18] sm:$0xff]
    %v122 = vld [vmem:[#allocation5 + $0x20] sm:$0xff]
    %v123 = vld [vmem:[#allocation5 + $0x28] sm:$0xff]
    %v124 = vld [vmem:[#allocation5 + $0x30] sm:$0xff]
    %v125 = vld [vmem:[#allocation5 + $0x38] sm:$0xff]
    %v126 = vld [vmem:[#allocation5 + $0x40] sm:$0xff]
    %v127 = vld [vmem:[#allocation5 + $0x48] sm:$0xff]
    %v128 = vld [vmem:[#allocation5 + $0x50] sm:$0xff]
    %v129 = vld [vmem:[#allocation5 + $0x58] sm:$0xff]
    %v130 = vld [vmem:[#allocation5 + $0x60] sm:$0xff]
    %v131 = vld [vmem:[#allocation5 + $0x68] sm:$0xff]
    %v132 = vld [vmem:[#allocation5 + $0x70] sm:$0xff]
    %v133 = vld [vmem:[#allocation5 + $0x78] sm:$0xff]
    %v134 = vld [vmem:[#allocation5 + $0x80] sm:$0xff]
    %v135 = vld [vmem:[#allocation5 + $0x88] sm:$0xff]
    %v136 = vld [vmem:[#allocation5 + $0x90] sm:$0xff]
    %v137 = vld [vmem:[#allocation5 + $0x98] sm:$0xff]
    %v138 = vld [vmem:[#allocation5 + $0xa0] sm:$0xff]
    %v139 = vld [vmem:[#allocation5 + $0xa8] sm:$0xff]
    %v140 = vld [vmem:[#allocation5 + $0xb0] sm:$0xff]
    %v141 = vld [vmem:[#allocation5 + $0xb8] sm:$0xff]
    %v142 = vld [vmem:[#allocation5 + $0xc0] sm:$0xff]
    %v143 = vld [vmem:[#allocation5 + $0xc8] sm:$0xff]
    %v144 = vld [vmem:[#allocation5 + $0xd0] sm:$0xff]
    %v145 = vld [vmem:[#allocation5 + $0xd8] sm:$0xff]
    %v146 = vld [vmem:[#allocation5 + $0xe0] sm:$0xff]
    %v147 = vld [vmem:[#allocation5 + $0xe8] sm:$0xff]
    %v148 = vld [vmem:[#allocation5 + $0xf0] sm:$0xff]
    %v149 = vld [vmem:[#allocation5 + $0xf8] sm:$0xff]
    %v150 = vld [vmem:[#allocation5 + $0x100] sm:$0xff]
    %v151 = vld [vmem:[#allocation5 + $0x108] sm:$0xff]
    %v152 = vld [vmem:[#allocation5 + $0x110] sm:$0xff]
    %v153 = vld [vmem:[#allocation5 + $0x118] sm:$0xff]
    %v154 = vld [vmem:[#allocation5 + $0x120] sm:$0xff]
    %v155 = vld [vmem:[#allocation5 + $0x128] sm:$0xff]
    %v156 = vld [vmem:[#allocation5 + $0x130] sm:$0xff]
    %v157 = vld [vmem:[#allocation5 + $0x138] sm:$0xff]
    %v158 = vld [vmem:[#allocation5 + $0x140] sm:$0xff]
    %v159 = vld [vmem:[#allocation5 + $0x148] sm:$0xff]
    %v160 = vld [vmem:[#allocation5 + $0x150] sm:$0xff]
    %v161 = vld [vmem:[#allocation5 + $0x158] sm:$0xff]
    %v162 = vld [vmem:[#allocation5 + $0x160] sm:$0xff]
    %v163 = vld [vmem:[#allocation5 + $0x168] sm:$0xff]
    %v164 = vld [vmem:[#allocation5 + $0x170] sm:$0xff]
    %v165 = vld [vmem:[#allocation5 + $0x178] sm:$0xff]
    %v166 = vld [vmem:[#allocation5 + $0x180] sm:$0xff]
    %v167 = vld [vmem:[#allocation5 + $0x188] sm:$0xff]
    %v168 = vld [vmem:[#allocation5 + $0x190] sm:$0xff]
    %v169 = vld [vmem:[#allocation5 + $0x198] sm:$0xff]
    %v170 = vld [vmem:[#allocation5 + $0x1a0] sm:$0xff]
    %v171 = vld [vmem:[#allocation5 + $0x1a8] sm:$0xff]
    %v172 = vld [vmem:[#allocation5 + $0x1b0] sm:$0xff]
    %v173 = vld [vmem:[#allocation5 + $0x1b8] sm:$0xff]
    %v174 = vld [vmem:[#allocation5 + $0x1c0] sm:$0xff]
    %v175 = vld [vmem:[#allocation5 + $0x1c8] sm:$0xff]
    %v176 = vld [vmem:[#allocation5 + $0x1d0] sm:$0xff]
    %v177 = vld [vmem:[#allocation5 + $0x1d8] sm:$0xff]
    %v178 = vld [vmem:[#allocation5 + $0x1e0] sm:$0xff]
    %v179 = vld [vmem:[#allocation5 + $0x1e8] sm:$0xff]
    %v180 = vld [vmem:[#allocation5 + $0x1f0] sm:$0xff]
    %v181 = vld [vmem:[#allocation5 + $0x1f8] sm:$0xff]
    %v182 = vld [vmem:[#allocation5 + $0x200] sm:$0xff]
    %v183 = vld [vmem:[#allocation5 + $0x208] sm:$0xff]
    %v184 = vld [vmem:[#allocation5 + $0x210] sm:$0xff]
    %v185 = vld [vmem:[#allocation5 + $0x218] sm:$0xff]
    %v186 = vld [vmem:[#allocation5 + $0x220] sm:$0xff]
    %v187 = vld [vmem:[#allocation5 + $0x228] sm:$0xff]
    %v188 = vld [vmem:[#allocation5 + $0x230] sm:$0xff]
    %v189 = vld [vmem:[#allocation5 + $0x238] sm:$0xff]
    %v190 = vld [vmem:[#allocation5 + $0x240] sm:$0xff]
    %v191 = vld [vmem:[#allocation5 + $0x248] sm:$0xff]
    %v192 = vld [vmem:[#allocation5 + $0x250] sm:$0xff]
    %v193 = vld [vmem:[#allocation5 + $0x258] sm:$0xff]
    %v194 = vld [vmem:[#allocation5 + $0x260] sm:$0xff]
    %v195 = vld [vmem:[#allocation5 + $0x268] sm:$0xff]
    %v196 = vld [vmem:[#allocation5 + $0x270] sm:$0xff]
    %v197 = vld [vmem:[#allocation5 + $0x278] sm:$0xff]
    %v198 = vld [vmem:[#allocation5 + $0x280] sm:$0xff]
    %v199 = vld [vmem:[#allocation5 + $0x288] sm:$0xff]
    %v200 = vld [vmem:[#allocation5 + $0x290] sm:$0xff]
    %v201 = vld [vmem:[#allocation5 + $0x298] sm:$0xff]
    %v202 = vld [vmem:[#allocation5 + $0x2a0] sm:$0xff]
    %v203 = vld [vmem:[#allocation5 + $0x2a8] sm:$0xff]
    %v204 = vld [vmem:[#allocation5 + $0x2b0] sm:$0xff]
    %v205 = vld [vmem:[#allocation5 + $0x2b8] sm:$0xff]
    %v206 = vld [vmem:[#allocation5 + $0x2c0] sm:$0xff]
    %v207 = vld [vmem:[#allocation5 + $0x2c8] sm:$0xff]
    %v208 = vld [vmem:[#allocation5 + $0x2d0] sm:$0xff]
    %v209 = vld [vmem:[#allocation5 + $0x2d8] sm:$0xff]
    %v210 = vld [vmem:[#allocation5 + $0x2e0] sm:$0xff]
    %v211 = vld [vmem:[#allocation5 + $0x2e8] sm:$0xff]
    %v212 = vld [vmem:[#allocation5 + $0x2f0] sm:$0xff]
    %v213 = vld [vmem:[#allocation5 + $0x2f8] sm:$0xff]
    %v214 = vld [vmem:[#allocation5 + $0x300] sm:$0xff]
    %v215 = vld [vmem:[#allocation5 + $0x308] sm:$0xff]
    %v216 = vld [vmem:[#allocation5 + $0x310] sm:$0xff]
    %v217 = vld [vmem:[#allocation5 + $0x318] sm:$0xff]
    %v218 = vld [vmem:[#allocation5 + $0x320] sm:$0xff]
    %v219 = vld [vmem:[#allocation5 + $0x328] sm:$0xff]
    %v220 = vld [vmem:[#allocation5 + $0x330] sm:$0xff]
    %v221 = vld [vmem:[#allocation5 + $0x338] sm:$0xff]
    %v222 = vld [vmem:[#allocation5 + $0x340] sm:$0xff]
    %v223 = vld [vmem:[#allocation5 + $0x348] sm:$0xff]
    %v224 = vld [vmem:[#allocation5 + $0x350] sm:$0xff]
    %v225 = vld [vmem:[#allocation5 + $0x358] sm:$0xff]
    %v226 = vld [vmem:[#allocation5 + $0x360] sm:$0xff]
    %v227 = vld [vmem:[#allocation5 + $0x368] sm:$0xff]
    %v228 = vld [vmem:[#allocation5 + $0x370] sm:$0xff]
    %v229 = vld [vmem:[#allocation5 + $0x378] sm:$0xff]
    %v230 = vld [vmem:[#allocation5 + $0x380] sm:$0xff]
    %v231 = vld [vmem:[#allocation5 + $0x388] sm:$0xff]
    %v232 = vld [vmem:[#allocation5 + $0x390] sm:$0xff]
    %v233 = vld [vmem:[#allocation5 + $0x398] sm:$0xff]
    %v234 = vld [vmem:[#allocation5 + $0x3a0] sm:$0xff]
    %v235 = vld [vmem:[#allocation5 + $0x3a8] sm:$0xff]
    %v236 = vld [vmem:[#allocation5 + $0x3b0] sm:$0xff]
    %v237 = vld [vmem:[#allocation5 + $0x3b8] sm:$0xff]
    %v238 = vld [vmem:[#allocation5 + $0x3c0] sm:$0xff]
    %v239 = vld [vmem:[#allocation5 + $0x3c8] sm:$0xff]
    %v240 = vld [vmem:[#allocation5 + $0x3d0] sm:$0xff]
    %v241 = vld [vmem:[#allocation5 + $0x3d8] sm:$0xff]
    %v242 = vld [vmem:[#allocation5 + $0x3e0] sm:$0xff]
    %v243 = vld [vmem:[#allocation5 + $0x3e8] sm:$0xff]
    %v244 = vld [vmem:[#allocation5 + $0x3f0] sm:$0xff]
    %v245 = vld [vmem:[#allocation5 + $0x3f8] sm:$0xff]
    %v247 = vlaneseq
    %v248 = vshrl.u32 %v247, 7
    %v249 = vsub.s32 0, %v248
    %v250 = vrot.slane %v89, %v249
    %v251 = vlaneseq
    %v252 = vshrl.u32 %v251, 7
    %v253 = vsub.s32 1, %v252
    %v254 = vrot.slane %v89, %v253
    %v385 = vunpack.c.l.b16 %v118
    %v386 = vunpack.c.h.b16 %v118
    %v387 = vunpack.c.l.b16 %v119
    %v388 = vunpack.c.h.b16 %v119
    %v389 = vunpack.c.l.b16 %v120
    %v390 = vunpack.c.h.b16 %v120
    %v391 = vunpack.c.l.b16 %v121
    %v392 = vunpack.c.h.b16 %v121
    %v393 = vunpack.c.l.b16 %v122
    %v394 = vunpack.c.h.b16 %v122
    %v395 = vunpack.c.l.b16 %v123
    %v396 = vunpack.c.h.b16 %v123
    %v397 = vunpack.c.l.b16 %v124
    %v398 = vunpack.c.h.b16 %v124
    %v399 = vunpack.c.l.b16 %v125
    %v400 = vunpack.c.h.b16 %v125
    %v401 = vunpack.c.l.b16 %v126
    %v402 = vunpack.c.h.b16 %v126
    %v403 = vunpack.c.l.b16 %v127
    %v404 = vunpack.c.h.b16 %v127
    %v405 = vunpack.c.l.b16 %v128
    %v406 = vunpack.c.h.b16 %v128
    %v407 = vunpack.c.l.b16 %v129
    %v408 = vunpack.c.h.b16 %v129
    %v409 = vunpack.c.l.b16 %v130
    %v410 = vunpack.c.h.b16 %v130
    %v411 = vunpack.c.l.b16 %v131
    %v412 = vunpack.c.h.b16 %v131
    %v413 = vunpack.c.l.b16 %v132
    %v414 = vunpack.c.h.b16 %v132
    %v415 = vunpack.c.l.b16 %v133
    %v416 = vunpack.c.h.b16 %v133
    %v417 = vunpack.c.l.b16 %v134
    %v418 = vunpack.c.h.b16 %v134
    %v419 = vunpack.c.l.b16 %v135
    %v420 = vunpack.c.h.b16 %v135
    %v421 = vunpack.c.l.b16 %v136
    %v422 = vunpack.c.h.b16 %v136
    %v423 = vunpack.c.l.b16 %v137
    %v424 = vunpack.c.h.b16 %v137
    %v425 = vunpack.c.l.b16 %v138
    %v426 = vunpack.c.h.b16 %v138
    %v427 = vunpack.c.l.b16 %v139
    %v428 = vunpack.c.h.b16 %v139
    %v429 = vunpack.c.l.b16 %v140
    %v430 = vunpack.c.h.b16 %v140
    %v431 = vunpack.c.l.b16 %v141
    %v432 = vunpack.c.h.b16 %v141
    %v433 = vunpack.c.l.b16 %v142
    %v434 = vunpack.c.h.b16 %v142
    %v435 = vunpack.c.l.b16 %v143
    %v436 = vunpack.c.h.b16 %v143
    %v437 = vunpack.c.l.b16 %v144
    %v438 = vunpack.c.h.b16 %v144
    %v439 = vunpack.c.l.b16 %v145
    %v440 = vunpack.c.h.b16 %v145
    %v441 = vunpack.c.l.b16 %v146
    %v442 = vunpack.c.h.b16 %v146
    %v443 = vunpack.c.l.b16 %v147
    %v444 = vunpack.c.h.b16 %v147
    %v445 = vunpack.c.l.b16 %v148
    %v446 = vunpack.c.h.b16 %v148
    %v447 = vunpack.c.l.b16 %v149
    %v448 = vunpack.c.h.b16 %v149
    %v449 = vunpack.c.l.b16 %v150
    %v450 = vunpack.c.h.b16 %v150
    %v451 = vunpack.c.l.b16 %v151
    %v452 = vunpack.c.h.b16 %v151
    %v453 = vunpack.c.l.b16 %v152
    %v454 = vunpack.c.h.b16 %v152
    %v455 = vunpack.c.l.b16 %v153
    %v456 = vunpack.c.h.b16 %v153
    %v457 = vunpack.c.l.b16 %v154
    %v458 = vunpack.c.h.b16 %v154
    %v459 = vunpack.c.l.b16 %v155
    %v460 = vunpack.c.h.b16 %v155
    %v461 = vunpack.c.l.b16 %v156
    %v462 = vunpack.c.h.b16 %v156
    %v463 = vunpack.c.l.b16 %v157
    %v464 = vunpack.c.h.b16 %v157
    %v465 = vunpack.c.l.b16 %v158
    %v466 = vunpack.c.h.b16 %v158
    %v467 = vunpack.c.l.b16 %v159
    %v468 = vunpack.c.h.b16 %v159
    %v469 = vunpack.c.l.b16 %v160
    %v470 = vunpack.c.h.b16 %v160
    %v471 = vunpack.c.l.b16 %v161
    %v472 = vunpack.c.h.b16 %v161
    %v473 = vunpack.c.l.b16 %v162
    %v474 = vunpack.c.h.b16 %v162
    %v475 = vunpack.c.l.b16 %v163
    %v476 = vunpack.c.h.b16 %v163
    %v477 = vunpack.c.l.b16 %v164
    %v478 = vunpack.c.h.b16 %v164
    %v479 = vunpack.c.l.b16 %v165
    %v480 = vunpack.c.h.b16 %v165
    %v481 = vunpack.c.l.b16 %v166
    %v482 = vunpack.c.h.b16 %v166
    %v483 = vunpack.c.l.b16 %v167
    %v484 = vunpack.c.h.b16 %v167
    %v485 = vunpack.c.l.b16 %v168
    %v486 = vunpack.c.h.b16 %v168
    %v487 = vunpack.c.l.b16 %v169
    %v488 = vunpack.c.h.b16 %v169
    %v489 = vunpack.c.l.b16 %v170
    %v490 = vunpack.c.h.b16 %v170
    %v491 = vunpack.c.l.b16 %v171
    %v492 = vunpack.c.h.b16 %v171
    %v493 = vunpack.c.l.b16 %v172
    %v494 = vunpack.c.h.b16 %v172
    %v495 = vunpack.c.l.b16 %v173
    %v496 = vunpack.c.h.b16 %v173
    %v497 = vunpack.c.l.b16 %v174
    %v498 = vunpack.c.h.b16 %v174
    %v499 = vunpack.c.l.b16 %v175
    %v500 = vunpack.c.h.b16 %v175
    %v501 = vunpack.c.l.b16 %v176
    %v502 = vunpack.c.h.b16 %v176
    %v503 = vunpack.c.l.b16 %v177
    %v504 = vunpack.c.h.b16 %v177
    %v505 = vunpack.c.l.b16 %v178
    %v506 = vunpack.c.h.b16 %v178
    %v507 = vunpack.c.l.b16 %v179
    %v508 = vunpack.c.h.b16 %v179
    %v509 = vunpack.c.l.b16 %v180
    %v510 = vunpack.c.h.b16 %v180
    %v511 = vunpack.c.l.b16 %v181
    %v512 = vunpack.c.h.b16 %v181
    %v513 = vunpack.c.l.b16 %v182
    %v514 = vunpack.c.h.b16 %v182
    %v515 = vunpack.c.l.b16 %v183
    %v516 = vunpack.c.h.b16 %v183
    %v517 = vunpack.c.l.b16 %v184
    %v518 = vunpack.c.h.b16 %v184
    %v519 = vunpack.c.l.b16 %v185
    %v520 = vunpack.c.h.b16 %v185
    %v521 = vunpack.c.l.b16 %v186
    %v522 = vunpack.c.h.b16 %v186
    %v523 = vunpack.c.l.b16 %v187
    %v524 = vunpack.c.h.b16 %v187
    %v525 = vunpack.c.l.b16 %v188
    %v526 = vunpack.c.h.b16 %v188
    %v527 = vunpack.c.l.b16 %v189
    %v528 = vunpack.c.h.b16 %v189
    %v529 = vunpack.c.l.b16 %v190
    %v530 = vunpack.c.h.b16 %v190
    %v531 = vunpack.c.l.b16 %v191
    %v532 = vunpack.c.h.b16 %v191
    %v533 = vunpack.c.l.b16 %v192
    %v534 = vunpack.c.h.b16 %v192
    %v535 = vunpack.c.l.b16 %v193
    %v536 = vunpack.c.h.b16 %v193
    %v537 = vunpack.c.l.b16 %v194
    %v538 = vunpack.c.h.b16 %v194
    %v539 = vunpack.c.l.b16 %v195
    %v540 = vunpack.c.h.b16 %v195
    %v541 = vunpack.c.l.b16 %v196
    %v542 = vunpack.c.h.b16 %v196
    %v543 = vunpack.c.l.b16 %v197
    %v544 = vunpack.c.h.b16 %v197
    %v545 = vunpack.c.l.b16 %v198
    %v546 = vunpack.c.h.b16 %v198
    %v547 = vunpack.c.l.b16 %v199
    %v548 = vunpack.c.h.b16 %v199
    %v549 = vunpack.c.l.b16 %v200
    %v550 = vunpack.c.h.b16 %v200
    %v551 = vunpack.c.l.b16 %v201
    %v552 = vunpack.c.h.b16 %v201
    %v553 = vunpack.c.l.b16 %v202
    %v554 = vunpack.c.h.b16 %v202
    %v555 = vunpack.c.l.b16 %v203
    %v556 = vunpack.c.h.b16 %v203
    %v557 = vunpack.c.l.b16 %v204
    %v558 = vunpack.c.h.b16 %v204
    %v559 = vunpack.c.l.b16 %v205
    %v560 = vunpack.c.h.b16 %v205
    %v561 = vunpack.c.l.b16 %v206
    %v562 = vunpack.c.h.b16 %v206
    %v563 = vunpack.c.l.b16 %v207
    %v564 = vunpack.c.h.b16 %v207
    %v565 = vunpack.c.l.b16 %v208
    %v566 = vunpack.c.h.b16 %v208
    %v567 = vunpack.c.l.b16 %v209
    %v568 = vunpack.c.h.b16 %v209
    %v569 = vunpack.c.l.b16 %v210
    %v570 = vunpack.c.h.b16 %v210
    %v571 = vunpack.c.l.b16 %v211
    %v572 = vunpack.c.h.b16 %v211
    %v573 = vunpack.c.l.b16 %v212
    %v574 = vunpack.c.h.b16 %v212
    %v575 = vunpack.c.l.b16 %v213
    %v576 = vunpack.c.h.b16 %v213
    %v577 = vunpack.c.l.b16 %v214
    %v578 = vunpack.c.h.b16 %v214
    %v579 = vunpack.c.l.b16 %v215
    %v580 = vunpack.c.h.b16 %v215
    %v581 = vunpack.c.l.b16 %v216
    %v582 = vunpack.c.h.b16 %v216
    %v583 = vunpack.c.l.b16 %v217
    %v584 = vunpack.c.h.b16 %v217
    %v585 = vunpack.c.l.b16 %v218
    %v586 = vunpack.c.h.b16 %v218
    %v587 = vunpack.c.l.b16 %v219
    %v588 = vunpack.c.h.b16 %v219
    %v589 = vunpack.c.l.b16 %v220
    %v590 = vunpack.c.h.b16 %v220
    %v591 = vunpack.c.l.b16 %v221
    %v592 = vunpack.c.h.b16 %v221
    %v593 = vunpack.c.l.b16 %v222
    %v594 = vunpack.c.h.b16 %v222
    %v595 = vunpack.c.l.b16 %v223
    %v596 = vunpack.c.h.b16 %v223
    %v597 = vunpack.c.l.b16 %v224
    %v598 = vunpack.c.h.b16 %v224
    %v599 = vunpack.c.l.b16 %v225
    %v600 = vunpack.c.h.b16 %v225
    %v601 = vunpack.c.l.b16 %v226
    %v602 = vunpack.c.h.b16 %v226
    %v603 = vunpack.c.l.b16 %v227
    %v604 = vunpack.c.h.b16 %v227
    %v605 = vunpack.c.l.b16 %v228
    %v606 = vunpack.c.h.b16 %v228
    %v607 = vunpack.c.l.b16 %v229
    %v608 = vunpack.c.h.b16 %v229
    %v609 = vunpack.c.l.b16 %v230
    %v610 = vunpack.c.h.b16 %v230
    %v611 = vunpack.c.l.b16 %v231
    %v612 = vunpack.c.h.b16 %v231
    %v613 = vunpack.c.l.b16 %v232
    %v614 = vunpack.c.h.b16 %v232
    %v615 = vunpack.c.l.b16 %v233
    %v616 = vunpack.c.h.b16 %v233
    %v617 = vunpack.c.l.b16 %v234
    %v618 = vunpack.c.h.b16 %v234
    %v619 = vunpack.c.l.b16 %v235
    %v620 = vunpack.c.h.b16 %v235
    %v621 = vunpack.c.l.b16 %v236
    %v622 = vunpack.c.h.b16 %v236
    %v623 = vunpack.c.l.b16 %v237
    %v624 = vunpack.c.h.b16 %v237
    %v625 = vunpack.c.l.b16 %v238
    %v626 = vunpack.c.h.b16 %v238
    %v627 = vunpack.c.l.b16 %v239
    %v628 = vunpack.c.h.b16 %v239
    %v629 = vunpack.c.l.b16 %v240
    %v630 = vunpack.c.h.b16 %v240
    %v631 = vunpack.c.l.b16 %v241
    %v632 = vunpack.c.h.b16 %v241
    %v633 = vunpack.c.l.b16 %v242
    %v634 = vunpack.c.h.b16 %v242
    %v635 = vunpack.c.l.b16 %v243
    %v636 = vunpack.c.h.b16 %v243
    %v637 = vunpack.c.l.b16 %v244
    %v638 = vunpack.c.h.b16 %v244
    %v639 = vunpack.c.l.b16 %v245
    %v640 = vunpack.c.h.b16 %v245
    %v641 = vpack.c.b16 %v387, %v385
    %v642 = vpack.c.b16 %v388, %v386
    %v643 = vpack.c.b16 %v391, %v389
    %v644 = vpack.c.b16 %v392, %v390
    %v645 = vpack.c.b16 %v395, %v393
    %v646 = vpack.c.b16 %v396, %v394
    %v647 = vpack.c.b16 %v399, %v397
    %v648 = vpack.c.b16 %v400, %v398
    %v649 = vpack.c.b16 %v403, %v401
    %v650 = vpack.c.b16 %v404, %v402
    %v651 = vpack.c.b16 %v407, %v405
    %v652 = vpack.c.b16 %v408, %v406
    %v653 = vpack.c.b16 %v411, %v409
    %v654 = vpack.c.b16 %v412, %v410
    %v655 = vpack.c.b16 %v415, %v413
    %v656 = vpack.c.b16 %v416, %v414
    %v657 = vpack.c.b16 %v419, %v417
    %v658 = vpack.c.b16 %v420, %v418
    %v659 = vpack.c.b16 %v423, %v421
    %v660 = vpack.c.b16 %v424, %v422
    %v661 = vpack.c.b16 %v427, %v425
    %v662 = vpack.c.b16 %v428, %v426
    %v663 = vpack.c.b16 %v431, %v429
    %v664 = vpack.c.b16 %v432, %v430
    %v665 = vpack.c.b16 %v435, %v433
    %v666 = vpack.c.b16 %v436, %v434
    %v667 = vpack.c.b16 %v439, %v437
    %v668 = vpack.c.b16 %v440, %v438
    %v669 = vpack.c.b16 %v443, %v441
    %v670 = vpack.c.b16 %v444, %v442
    %v671 = vpack.c.b16 %v447, %v445
    %v672 = vpack.c.b16 %v448, %v446
    %v673 = vpack.c.b16 %v451, %v449
    %v674 = vpack.c.b16 %v452, %v450
    %v675 = vpack.c.b16 %v455, %v453
    %v676 = vpack.c.b16 %v456, %v454
    %v677 = vpack.c.b16 %v459, %v457
    %v678 = vpack.c.b16 %v460, %v458
    %v679 = vpack.c.b16 %v463, %v461
    %v680 = vpack.c.b16 %v464, %v462
    %v681 = vpack.c.b16 %v467, %v465
    %v682 = vpack.c.b16 %v468, %v466
    %v683 = vpack.c.b16 %v471, %v469
    %v684 = vpack.c.b16 %v472, %v470
    %v685 = vpack.c.b16 %v475, %v473
    %v686 = vpack.c.b16 %v476, %v474
    %v687 = vpack.c.b16 %v479, %v477
    %v688 = vpack.c.b16 %v480, %v478
    %v689 = vpack.c.b16 %v483, %v481
    %v690 = vpack.c.b16 %v484, %v482
    %v691 = vpack.c.b16 %v487, %v485
    %v692 = vpack.c.b16 %v488, %v486
    %v693 = vpack.c.b16 %v491, %v489
    %v694 = vpack.c.b16 %v492, %v490
    %v695 = vpack.c.b16 %v495, %v493
    %v696 = vpack.c.b16 %v496, %v494
    %v697 = vpack.c.b16 %v499, %v497
    %v698 = vpack.c.b16 %v500, %v498
    %v699 = vpack.c.b16 %v503, %v501
    %v700 = vpack.c.b16 %v504, %v502
    %v701 = vpack.c.b16 %v507, %v505
    %v702 = vpack.c.b16 %v508, %v506
    %v703 = vpack.c.b16 %v511, %v509
    %v704 = vpack.c.b16 %v512, %v510
    %v705 = vpack.c.b16 %v515, %v513
    %v706 = vpack.c.b16 %v516, %v514
    %v707 = vpack.c.b16 %v519, %v517
    %v708 = vpack.c.b16 %v520, %v518
    %v709 = vpack.c.b16 %v523, %v521
    %v710 = vpack.c.b16 %v524, %v522
    %v711 = vpack.c.b16 %v527, %v525
    %v712 = vpack.c.b16 %v528, %v526
    %v713 = vpack.c.b16 %v531, %v529
    %v714 = vpack.c.b16 %v532, %v530
    %v715 = vpack.c.b16 %v535, %v533
    %v716 = vpack.c.b16 %v536, %v534
    %v717 = vpack.c.b16 %v539, %v537
    %v718 = vpack.c.b16 %v540, %v538
    %v719 = vpack.c.b16 %v543, %v541
    %v720 = vpack.c.b16 %v544, %v542
    %v721 = vpack.c.b16 %v547, %v545
    %v722 = vpack.c.b16 %v548, %v546
    %v723 = vpack.c.b16 %v551, %v549
    %v724 = vpack.c.b16 %v552, %v550
    %v725 = vpack.c.b16 %v555, %v553
    %v726 = vpack.c.b16 %v556, %v554
    %v727 = vpack.c.b16 %v559, %v557
    %v728 = vpack.c.b16 %v560, %v558
    %v729 = vpack.c.b16 %v563, %v561
    %v730 = vpack.c.b16 %v564, %v562
    %v731 = vpack.c.b16 %v567, %v565
    %v732 = vpack.c.b16 %v568, %v566
    %v733 = vpack.c.b16 %v571, %v569
    %v734 = vpack.c.b16 %v572, %v570
    %v735 = vpack.c.b16 %v575, %v573
    %v736 = vpack.c.b16 %v576, %v574
    %v737 = vpack.c.b16 %v579, %v577
    %v738 = vpack.c.b16 %v580, %v578
    %v739 = vpack.c.b16 %v583, %v581
    %v740 = vpack.c.b16 %v584, %v582
    %v741 = vpack.c.b16 %v587, %v585
    %v742 = vpack.c.b16 %v588, %v586
    %v743 = vpack.c.b16 %v591, %v589
    %v744 = vpack.c.b16 %v592, %v590
    %v745 = vpack.c.b16 %v595, %v593
    %v746 = vpack.c.b16 %v596, %v594
    %v747 = vpack.c.b16 %v599, %v597
    %v748 = vpack.c.b16 %v600, %v598
    %v749 = vpack.c.b16 %v603, %v601
    %v750 = vpack.c.b16 %v604, %v602
    %v751 = vpack.c.b16 %v607, %v605
    %v752 = vpack.c.b16 %v608, %v606
    %v753 = vpack.c.b16 %v611, %v609
    %v754 = vpack.c.b16 %v612, %v610
    %v755 = vpack.c.b16 %v615, %v613
    %v756 = vpack.c.b16 %v616, %v614
    %v757 = vpack.c.b16 %v619, %v617
    %v758 = vpack.c.b16 %v620, %v618
    %v759 = vpack.c.b16 %v623, %v621
    %v760 = vpack.c.b16 %v624, %v622
    %v761 = vpack.c.b16 %v627, %v625
    %v762 = vpack.c.b16 %v628, %v626
    %v763 = vpack.c.b16 %v631, %v629
    %v764 = vpack.c.b16 %v632, %v630
    %v765 = vpack.c.b16 %v635, %v633
    %v766 = vpack.c.b16 %v636, %v634
    %v767 = vpack.c.b16 %v639, %v637
    %v768 = vpack.c.b16 %v640, %v638
    %897 = vmatprep.subr.bf16.mxu0 %v642
    %898 = vmatpush1.bf16.msra.mxu0 %v641
    %899 = vmatprep.subr.bf16.mxu0 %v644
    %900 = vmatpush1.bf16.msra.mxu0 %v643
    %901 = vmatprep.subr.bf16.mxu0 %v646
    %902 = vmatpush1.bf16.msra.mxu0 %v645
    %903 = vmatprep.subr.bf16.mxu0 %v648
    %904 = vmatpush1.bf16.msra.mxu0 %v647
    %905 = vmatprep.subr.bf16.mxu0 %v650
    %906 = vmatpush1.bf16.msra.mxu0 %v649
    %907 = vmatprep.subr.bf16.mxu0 %v652
    %908 = vmatpush1.bf16.msra.mxu0 %v651
    %909 = vmatprep.subr.bf16.mxu0 %v654
    %910 = vmatpush1.bf16.msra.mxu0 %v653
    %911 = vmatprep.subr.bf16.mxu0 %v656
    %912 = vmatpush1.bf16.msra.mxu0 %v655
    %913 = vmatprep.subr.bf16.mxu0 %v658
    %914 = vmatpush1.bf16.msra.mxu0 %v657
    %915 = vmatprep.subr.bf16.mxu0 %v660
    %916 = vmatpush1.bf16.msra.mxu0 %v659
    %917 = vmatprep.subr.bf16.mxu0 %v662
    %918 = vmatpush1.bf16.msra.mxu0 %v661
    %919 = vmatprep.subr.bf16.mxu0 %v664
    %920 = vmatpush1.bf16.msra.mxu0 %v663
    %921 = vmatprep.subr.bf16.mxu0 %v666
    %922 = vmatpush1.bf16.msra.mxu0 %v665
    %923 = vmatprep.subr.bf16.mxu0 %v668
    %924 = vmatpush1.bf16.msra.mxu0 %v667
    %925 = vmatprep.subr.bf16.mxu0 %v670
    %926 = vmatpush1.bf16.msra.mxu0 %v669
    %927 = vmatprep.subr.bf16.mxu0 %v672
    %928 = vmatpush1.bf16.msra.mxu0 %v671
    %929 = vmatprep.mubr.bf16.mxu0 %v111
    %930 = vmatmul.mubr.bf16.gmra.mrb[0].mxu0 %v110
    %v931 = vpop.f32.mrb[0].mxu0
    %v932 = vadd.f32 %v250, %v931
    %v933 = vpop.f32.mrb[0].mxu0
    %v934 = vadd.f32 %v254, %v933
    %v935 = vpop.f32.mrb[0].mxu0
    %v936 = vadd.f32 %v250, %v935
    %v937 = vpop.f32.mrb[0].mxu0
    %v938 = vadd.f32 %v254, %v937
    %939 = vdwg.mxu0
    %940 = vmatprep.subr.bf16.mxu0 %v674
    %941 = vmatpush1.bf16.msra.mxu0 %v673
    %942 = vmatprep.subr.bf16.mxu0 %v676
    %943 = vmatpush1.bf16.msra.mxu0 %v675
    %944 = vmatprep.subr.bf16.mxu0 %v678
    %945 = vmatpush1.bf16.msra.mxu0 %v677
    %946 = vmatprep.subr.bf16.mxu0 %v680
    %947 = vmatpush1.bf16.msra.mxu0 %v679
    %948 = vmatprep.subr.bf16.mxu0 %v682
    %949 = vmatpush1.bf16.msra.mxu0 %v681
    %950 = vmatprep.subr.bf16.mxu0 %v684
    %951 = vmatpush1.bf16.msra.mxu0 %v683
    %952 = vmatprep.subr.bf16.mxu0 %v686
    %953 = vmatpush1.bf16.msra.mxu0 %v685
    %954 = vmatprep.subr.bf16.mxu0 %v688
    %955 = vmatpush1.bf16.msra.mxu0 %v687
    %956 = vmatprep.subr.bf16.mxu0 %v690
    %957 = vmatpush1.bf16.msra.mxu0 %v689
    %958 = vmatprep.subr.bf16.mxu0 %v692
    %959 = vmatpush1.bf16.msra.mxu0 %v691
    %960 = vmatprep.subr.bf16.mxu0 %v694
    %961 = vmatpush1.bf16.msra.mxu0 %v693
    %962 = vmatprep.subr.bf16.mxu0 %v696
    %963 = vmatpush1.bf16.msra.mxu0 %v695
    %964 = vmatprep.subr.bf16.mxu0 %v698
    %965 = vmatpush1.bf16.msra.mxu0 %v697
    %966 = vmatprep.subr.bf16.mxu0 %v700
    %967 = vmatpush1.bf16.msra.mxu0 %v699
    %968 = vmatprep.subr.bf16.mxu0 %v702
    %969 = vmatpush1.bf16.msra.mxu0 %v701
    %970 = vmatprep.subr.bf16.mxu0 %v704
    %971 = vmatpush1.bf16.msra.mxu0 %v703
    %972 = vmatprep.mubr.bf16.mxu0 %v113
    %973 = vmatmul.mubr.bf16.gmra.mrb[0].mxu0 %v112
    %v974 = vpop.f32.mrb[0].mxu0
    %v975 = vadd.f32 %v932, %v974
    %v976 = vpop.f32.mrb[0].mxu0
    %v977 = vadd.f32 %v934, %v976
    %v978 = vpop.f32.mrb[0].mxu0
    %v979 = vadd.f32 %v936, %v978
    %v980 = vpop.f32.mrb[0].mxu0
    %v981 = vadd.f32 %v938, %v980
    %982 = vdwg.mxu0
    %983 = vmatprep.subr.bf16.mxu0 %v706
    %984 = vmatpush1.bf16.msra.mxu0 %v705
    %985 = vmatprep.subr.bf16.mxu0 %v708
    %986 = vmatpush1.bf16.msra.mxu0 %v707
    %987 = vmatprep.subr.bf16.mxu0 %v710
    %988 = vmatpush1.bf16.msra.mxu0 %v709
    %989 = vmatprep.subr.bf16.mxu0 %v712
    %990 = vmatpush1.bf16.msra.mxu0 %v711
    %991 = vmatprep.subr.bf16.mxu0 %v714
    %992 = vmatpush1.bf16.msra.mxu0 %v713
    %993 = vmatprep.subr.bf16.mxu0 %v716
    %994 = vmatpush1.bf16.msra.mxu0 %v715
    %995 = vmatprep.subr.bf16.mxu0 %v718
    %996 = vmatpush1.bf16.msra.mxu0 %v717
    %997 = vmatprep.subr.bf16.mxu0 %v720
    %998 = vmatpush1.bf16.msra.mxu0 %v719
    %999 = vmatprep.subr.bf16.mxu0 %v722
    %1000 = vmatpush1.bf16.msra.mxu0 %v721
    %1001 = vmatprep.subr.bf16.mxu0 %v724
    %1002 = vmatpush1.bf16.msra.mxu0 %v723
    %1003 = vmatprep.subr.bf16.mxu0 %v726
    %1004 = vmatpush1.bf16.msra.mxu0 %v725
    %1005 = vmatprep.subr.bf16.mxu0 %v728
    %1006 = vmatpush1.bf16.msra.mxu0 %v727
    %1007 = vmatprep.subr.bf16.mxu0 %v730
    %1008 = vmatpush1.bf16.msra.mxu0 %v729
    %1009 = vmatprep.subr.bf16.mxu0 %v732
    %1010 = vmatpush1.bf16.msra.mxu0 %v731
    %1011 = vmatprep.subr.bf16.mxu0 %v734
    %1012 = vmatpush1.bf16.msra.mxu0 %v733
    %1013 = vmatprep.subr.bf16.mxu0 %v736
    %1014 = vmatpush1.bf16.msra.mxu0 %v735
    %1015 = vmatprep.mubr.bf16.mxu0 %v115
    %1016 = vmatmul.mubr.bf16.gmra.mrb[0].mxu0 %v114
    %v1017 = vpop.f32.mrb[0].mxu0
    %v1018 = vadd.f32 %v975, %v1017
    %v1019 = vpop.f32.mrb[0].mxu0
    %v1020 = vadd.f32 %v977, %v1019
    %v1021 = vpop.f32.mrb[0].mxu0
    %v1022 = vadd.f32 %v979, %v1021
    %v1023 = vpop.f32.mrb[0].mxu0
    %v1024 = vadd.f32 %v981, %v1023
    %1025 = vdwg.mxu0
    %1026 = vmatprep.subr.bf16.mxu0 %v738
    %1027 = vmatpush1.bf16.msra.mxu0 %v737
    %1028 = vmatprep.subr.bf16.mxu0 %v740
    %1029 = vmatpush1.bf16.msra.mxu0 %v739
    %1030 = vmatprep.subr.bf16.mxu0 %v742
    %1031 = vmatpush1.bf16.msra.mxu0 %v741
    %1032 = vmatprep.subr.bf16.mxu0 %v744
    %1033 = vmatpush1.bf16.msra.mxu0 %v743
    %1034 = vmatprep.subr.bf16.mxu0 %v746
    %1035 = vmatpush1.bf16.msra.mxu0 %v745
    %1036 = vmatprep.subr.bf16.mxu0 %v748
    %1037 = vmatpush1.bf16.msra.mxu0 %v747
    %1038 = vmatprep.subr.bf16.mxu0 %v750
    %1039 = vmatpush1.bf16.msra.mxu0 %v749
    %1040 = vmatprep.subr.bf16.mxu0 %v752
    %1041 = vmatpush1.bf16.msra.mxu0 %v751
    %1042 = vmatprep.subr.bf16.mxu0 %v754
    %1043 = vmatpush1.bf16.msra.mxu0 %v753
    %1044 = vmatprep.subr.bf16.mxu0 %v756
    %1045 = vmatpush1.bf16.msra.mxu0 %v755
    %1046 = vmatprep.subr.bf16.mxu0 %v758
    %1047 = vmatpush1.bf16.msra.mxu0 %v757
    %1048 = vmatprep.subr.bf16.mxu0 %v760
    %1049 = vmatpush1.bf16.msra.mxu0 %v759
    %1050 = vmatprep.subr.bf16.mxu0 %v762
    %1051 = vmatpush1.bf16.msra.mxu0 %v761
    %1052 = vmatprep.subr.bf16.mxu0 %v764
    %1053 = vmatpush1.bf16.msra.mxu0 %v763
    %1054 = vmatprep.subr.bf16.mxu0 %v766
    %1055 = vmatpush1.bf16.msra.mxu0 %v765
    %1056 = vmatprep.subr.bf16.mxu0 %v768
    %1057 = vmatpush1.bf16.msra.mxu0 %v767
    %1058 = vmatprep.mubr.bf16.mxu0 %v117
    %1059 = vmatmul.mubr.bf16.gmra.mrb[0].mxu0 %v116
    %v1060 = vpop.f32.mrb[0].mxu0
    %v1061 = vadd.f32 %v1018, %v1060
    %v1062 = vpop.f32.mrb[0].mxu0
    %v1063 = vadd.f32 %v1020, %v1062
    %v1064 = vpop.f32.mrb[0].mxu0
    %v1065 = vadd.f32 %v1022, %v1064
    %v1066 = vpop.f32.mrb[0].mxu0
    %v1067 = vadd.f32 %v1024, %v1066
    %1068 = vdwg.mxu0
    %v1069 = vmax.f32 %v1061, 0.0
    %v1070 = vmax.f32 %v1063, 0.0
    %v1071 = vmax.f32 %v1065, 0.0
    %v1072 = vmax.f32 %v1067, 0.0
    %v1073 = vpack.c.bf16 %v1071, %v1069
    %v1074 = vpack.c.bf16 %v1072, %v1070
    %v1075 = vld [vmem:[#allocation7] sm:$0xff]
    %v1076 = vld [vmem:[#allocation7 + $0x8] sm:$0xff]
    %v1077 = vld [vmem:[#allocation7 + $0x10] sm:$0xff]
    %v1078 = vld [vmem:[#allocation7 + $0x18] sm:$0xff]
    %v1079 = vld [vmem:[#allocation7 + $0x20] sm:$0xff]
    %v1080 = vld [vmem:[#allocation7 + $0x28] sm:$0xff]
    %v1081 = vld [vmem:[#allocation7 + $0x30] sm:$0xff]
    %v1082 = vld [vmem:[#allocation7 + $0x38] sm:$0xff]
    %v1083 = vld [vmem:[#allocation7 + $0x40] sm:$0xff]
    %v1084 = vld [vmem:[#allocation7 + $0x48] sm:$0xff]
    %v1085 = vld [vmem:[#allocation7 + $0x50] sm:$0xff]
    %v1086 = vld [vmem:[#allocation7 + $0x58] sm:$0xff]
    %v1087 = vld [vmem:[#allocation7 + $0x60] sm:$0xff]
    %v1088 = vld [vmem:[#allocation7 + $0x68] sm:$0xff]
    %v1089 = vld [vmem:[#allocation7 + $0x70] sm:$0xff]
    %v1090 = vld [vmem:[#allocation7 + $0x78] sm:$0xff]
    %v1091 = vld [vmem:[#allocation7 + $0x80] sm:$0xff]
    %v1092 = vld [vmem:[#allocation7 + $0x88] sm:$0xff]
    %v1093 = vld [vmem:[#allocation7 + $0x90] sm:$0xff]
    %v1094 = vld [vmem:[#allocation7 + $0x98] sm:$0xff]
    %v1095 = vld [vmem:[#allocation7 + $0xa0] sm:$0xff]
    %v1096 = vld [vmem:[#allocation7 + $0xa8] sm:$0xff]
    %v1097 = vld [vmem:[#allocation7 + $0xb0] sm:$0xff]
    %v1098 = vld [vmem:[#allocation7 + $0xb8] sm:$0xff]
    %v1099 = vld [vmem:[#allocation7 + $0xc0] sm:$0xff]
    %v1100 = vld [vmem:[#allocation7 + $0xc8] sm:$0xff]
    %v1101 = vld [vmem:[#allocation7 + $0xd0] sm:$0xff]
    %v1102 = vld [vmem:[#allocation7 + $0xd8] sm:$0xff]
    %v1103 = vld [vmem:[#allocation7 + $0xe0] sm:$0xff]
    %v1104 = vld [vmem:[#allocation7 + $0xe8] sm:$0xff]
    %v1105 = vld [vmem:[#allocation7 + $0xf0] sm:$0xff]
    %v1106 = vld [vmem:[#allocation7 + $0xf8] sm:$0xff]
    %v1108 = vlaneseq
    %v1109 = vshrl.u32 %v1108, 7
    %v1110 = vsub.s32 0, %v1109
    %v1111 = vrot.slane %v90, %v1110
    %v1112 = vlaneseq
    %v1113 = vshrl.u32 %v1112, 7
    %v1114 = vsub.s32 1, %v1113
    %v1115 = vrot.slane %v90, %v1114
    %v1150 = vunpack.c.l.b16 %v1075
    %v1151 = vunpack.c.h.b16 %v1075
    %v1152 = vunpack.c.l.b16 %v1076
    %v1153 = vunpack.c.h.b16 %v1076
    %v1154 = vunpack.c.l.b16 %v1077
    %v1155 = vunpack.c.h.b16 %v1077
    %v1156 = vunpack.c.l.b16 %v1078
    %v1157 = vunpack.c.h.b16 %v1078
    %v1158 = vunpack.c.l.b16 %v1079
    %v1159 = vunpack.c.h.b16 %v1079
    %v1160 = vunpack.c.l.b16 %v1080
    %v1161 = vunpack.c.h.b16 %v1080
    %v1162 = vunpack.c.l.b16 %v1081
    %v1163 = vunpack.c.h.b16 %v1081
    %v1164 = vunpack.c.l.b16 %v1082
    %v1165 = vunpack.c.h.b16 %v1082
    %v1166 = vunpack.c.l.b16 %v1083
    %v1167 = vunpack.c.h.b16 %v1083
    %v1168 = vunpack.c.l.b16 %v1084
    %v1169 = vunpack.c.h.b16 %v1084
    %v1170 = vunpack.c.l.b16 %v1085
    %v1171 = vunpack.c.h.b16 %v1085
    %v1172 = vunpack.c.l.b16 %v1086
    %v1173 = vunpack.c.h.b16 %v1086
    %v1174 = vunpack.c.l.b16 %v1087
    %v1175 = vunpack.c.h.b16 %v1087
    %v1176 = vunpack.c.l.b16 %v1088
    %v1177 = vunpack.c.h.b16 %v1088
    %v1178 = vunpack.c.l.b16 %v1089
    %v1179 = vunpack.c.h.b16 %v1089
    %v1180 = vunpack.c.l.b16 %v1090
    %v1181 = vunpack.c.h.b16 %v1090
    %v1182 = vunpack.c.l.b16 %v1091
    %v1183 = vunpack.c.h.b16 %v1091
    %v1184 = vunpack.c.l.b16 %v1092
    %v1185 = vunpack.c.h.b16 %v1092
    %v1186 = vunpack.c.l.b16 %v1093
    %v1187 = vunpack.c.h.b16 %v1093
    %v1188 = vunpack.c.l.b16 %v1094
    %v1189 = vunpack.c.h.b16 %v1094
    %v1190 = vunpack.c.l.b16 %v1095
    %v1191 = vunpack.c.h.b16 %v1095
    %v1192 = vunpack.c.l.b16 %v1096
    %v1193 = vunpack.c.h.b16 %v1096
    %v1194 = vunpack.c.l.b16 %v1097
    %v1195 = vunpack.c.h.b16 %v1097
    %v1196 = vunpack.c.l.b16 %v1098
    %v1197 = vunpack.c.h.b16 %v1098
    %v1198 = vunpack.c.l.b16 %v1099
    %v1199 = vunpack.c.h.b16 %v1099
    %v1200 = vunpack.c.l.b16 %v1100
    %v1201 = vunpack.c.h.b16 %v1100
    %v1202 = vunpack.c.l.b16 %v1101
    %v1203 = vunpack.c.h.b16 %v1101
    %v1204 = vunpack.c.l.b16 %v1102
    %v1205 = vunpack.c.h.b16 %v1102
    %v1206 = vunpack.c.l.b16 %v1103
    %v1207 = vunpack.c.h.b16 %v1103
    %v1208 = vunpack.c.l.b16 %v1104
    %v1209 = vunpack.c.h.b16 %v1104
    %v1210 = vunpack.c.l.b16 %v1105
    %v1211 = vunpack.c.h.b16 %v1105
    %v1212 = vunpack.c.l.b16 %v1106
    %v1213 = vunpack.c.h.b16 %v1106
    %v1214 = vpack.c.b16 %v1152, %v1150
    %v1215 = vpack.c.b16 %v1153, %v1151
    %v1216 = vpack.c.b16 %v1156, %v1154
    %v1217 = vpack.c.b16 %v1157, %v1155
    %v1218 = vpack.c.b16 %v1160, %v1158
    %v1219 = vpack.c.b16 %v1161, %v1159
    %v1220 = vpack.c.b16 %v1164, %v1162
    %v1221 = vpack.c.b16 %v1165, %v1163
    %v1222 = vpack.c.b16 %v1168, %v1166
    %v1223 = vpack.c.b16 %v1169, %v1167
    %v1224 = vpack.c.b16 %v1172, %v1170
    %v1225 = vpack.c.b16 %v1173, %v1171
    %v1226 = vpack.c.b16 %v1176, %v1174
    %v1227 = vpack.c.b16 %v1177, %v1175
    %v1228 = vpack.c.b16 %v1180, %v1178
    %v1229 = vpack.c.b16 %v1181, %v1179
    %v1230 = vpack.c.b16 %v1184, %v1182
    %v1231 = vpack.c.b16 %v1185, %v1183
    %v1232 = vpack.c.b16 %v1188, %v1186
    %v1233 = vpack.c.b16 %v1189, %v1187
    %v1234 = vpack.c.b16 %v1192, %v1190
    %v1235 = vpack.c.b16 %v1193, %v1191
    %v1236 = vpack.c.b16 %v1196, %v1194
    %v1237 = vpack.c.b16 %v1197, %v1195
    %v1238 = vpack.c.b16 %v1200, %v1198
    %v1239 = vpack.c.b16 %v1201, %v1199
    %v1240 = vpack.c.b16 %v1204, %v1202
    %v1241 = vpack.c.b16 %v1205, %v1203
    %v1242 = vpack.c.b16 %v1208, %v1206
    %v1243 = vpack.c.b16 %v1209, %v1207
    %v1244 = vpack.c.b16 %v1212, %v1210
    %v1245 = vpack.c.b16 %v1213, %v1211
    %1278 = vmatprep.subr.bf16.mxu0 %v1215
    %1279 = vmatpush1.bf16.msra.mxu0 %v1214
    %1280 = vmatprep.subr.bf16.mxu0 %v1217
    %1281 = vmatpush1.bf16.msra.mxu0 %v1216
    %1282 = vmatprep.subr.bf16.mxu0 %v1219
    %1283 = vmatpush1.bf16.msra.mxu0 %v1218
    %1284 = vmatprep.subr.bf16.mxu0 %v1221
    %1285 = vmatpush1.bf16.msra.mxu0 %v1220
    %1286 = vmatprep.subr.bf16.mxu0 %v1223
    %1287 = vmatpush1.bf16.msra.mxu0 %v1222
    %1288 = vmatprep.subr.bf16.mxu0 %v1225
    %1289 = vmatpush1.bf16.msra.mxu0 %v1224
    %1290 = vmatprep.subr.bf16.mxu0 %v1227
    %1291 = vmatpush1.bf16.msra.mxu0 %v1226
    %1292 = vmatprep.subr.bf16.mxu0 %v1229
    %1293 = vmatpush1.bf16.msra.mxu0 %v1228
    %1294 = vmatprep.subr.bf16.mxu0 %v1231
    %1295 = vmatpush1.bf16.msra.mxu0 %v1230
    %1296 = vmatprep.subr.bf16.mxu0 %v1233
    %1297 = vmatpush1.bf16.msra.mxu0 %v1232
    %1298 = vmatprep.subr.bf16.mxu0 %v1235
    %1299 = vmatpush1.bf16.msra.mxu0 %v1234
    %1300 = vmatprep.subr.bf16.mxu0 %v1237
    %1301 = vmatpush1.bf16.msra.mxu0 %v1236
    %1302 = vmatprep.subr.bf16.mxu0 %v1239
    %1303 = vmatpush1.bf16.msra.mxu0 %v1238
    %1304 = vmatprep.subr.bf16.mxu0 %v1241
    %1305 = vmatpush1.bf16.msra.mxu0 %v1240
    %1306 = vmatprep.subr.bf16.mxu0 %v1243
    %1307 = vmatpush1.bf16.msra.mxu0 %v1242
    %1308 = vmatprep.subr.bf16.mxu0 %v1245
    %1309 = vmatpush1.bf16.msra.mxu0 %v1244
    %1310 = vmatprep.mubr.bf16.mxu0 %v1074
    %1311 = vmatmul.mubr.bf16.gmra.mrb[0].mxu0 %v1073
    %v1312 = vpop.f32.mrb[0].mxu0
    %v1313 = vadd.f32 %v1111, %v1312
    %v1314 = vpop.f32.mrb[0].mxu0
    %v1315 = vadd.f32 %v1115, %v1314
    %v1316 = vpop.f32.mrb[0].mxu0
    %v1317 = vadd.f32 %v1111, %v1316
    %v1318 = vpop.f32.mrb[0].mxu0
    %v1319 = vadd.f32 %v1115, %v1318
    %1320 = vdwg.mxu0
    %v1321 = vmax.f32 %v1313, 0.0
    %v1322 = vmax.f32 %v1315, 0.0
    %v1323 = vmax.f32 %v1317, 0.0
    %v1324 = vmax.f32 %v1319, 0.0
    %v1325 = vpack.c.bf16 %v1323, %v1321
    %v1326 = vpack.c.bf16 %v1324, %v1322
    %v1327 = vld [vmem:[#allocation8] sm:$0xff]
    %v1328 = vld [vmem:[#allocation8 + $0x8] sm:$0xff]
    %v1329 = vld [vmem:[#allocation8 + $0x10] sm:$0xff]
    %v1330 = vld [vmem:[#allocation8 + $0x18] sm:$0xff]
    %v1331 = vld [vmem:[#allocation8 + $0x20] sm:$0xff]
    %v1332 = vld [vmem:[#allocation8 + $0x28] sm:$0xff]
    %v1333 = vld [vmem:[#allocation8 + $0x30] sm:$0xff]
    %v1334 = vld [vmem:[#allocation8 + $0x38] sm:$0xff]
    %v1335 = vld [vmem:[#allocation8 + $0x40] sm:$0xff]
    %v1336 = vld [vmem:[#allocation8 + $0x48] sm:$0xff]
    %v1337 = vld [vmem:[#allocation8 + $0x50] sm:$0xff]
    %v1338 = vld [vmem:[#allocation8 + $0x58] sm:$0xff]
    %v1339 = vld [vmem:[#allocation8 + $0x60] sm:$0xff]
    %v1340 = vld [vmem:[#allocation8 + $0x68] sm:$0xff]
    %v1341 = vld [vmem:[#allocation8 + $0x70] sm:$0xff]
    %v1342 = vld [vmem:[#allocation8 + $0x78] sm:$0xff]
    %v1343 = vld [vmem:[#allocation8 + $0x80] sm:$0xff]
    %v1344 = vld [vmem:[#allocation8 + $0x88] sm:$0xff]
    %v1345 = vld [vmem:[#allocation8 + $0x90] sm:$0xff]
    %v1346 = vld [vmem:[#allocation8 + $0x98] sm:$0xff]
    %v1347 = vld [vmem:[#allocation8 + $0xa0] sm:$0xff]
    %v1348 = vld [vmem:[#allocation8 + $0xa8] sm:$0xff]
    %v1349 = vld [vmem:[#allocation8 + $0xb0] sm:$0xff]
    %v1350 = vld [vmem:[#allocation8 + $0xb8] sm:$0xff]
    %v1351 = vld [vmem:[#allocation8 + $0xc0] sm:$0xff]
    %v1352 = vld [vmem:[#allocation8 + $0xc8] sm:$0xff]
    %v1353 = vld [vmem:[#allocation8 + $0xd0] sm:$0xff]
    %v1354 = vld [vmem:[#allocation8 + $0xd8] sm:$0xff]
    %v1355 = vld [vmem:[#allocation8 + $0xe0] sm:$0xff]
    %v1356 = vld [vmem:[#allocation8 + $0xe8] sm:$0xff]
    %v1357 = vld [vmem:[#allocation8 + $0xf0] sm:$0xff]
    %v1358 = vld [vmem:[#allocation8 + $0xf8] sm:$0xff]
    %v1360 = vlaneseq
    %v1361 = vshrl.u32 %v1360, 7
    %v1362 = vsub.s32 0, %v1361
    %v1363 = vrot.slane %v91, %v1362
    %v1364 = vlaneseq
    %v1365 = vshrl.u32 %v1364, 7
    %v1366 = vsub.s32 1, %v1365
    %v1367 = vrot.slane %v91, %v1366
    %v1402 = vunpack.c.l.b16 %v1327
    %v1403 = vunpack.c.h.b16 %v1327
    %v1404 = vunpack.c.l.b16 %v1328
    %v1405 = vunpack.c.h.b16 %v1328
    %v1406 = vunpack.c.l.b16 %v1329
    %v1407 = vunpack.c.h.b16 %v1329
    %v1408 = vunpack.c.l.b16 %v1330
    %v1409 = vunpack.c.h.b16 %v1330
    %v1410 = vunpack.c.l.b16 %v1331
    %v1411 = vunpack.c.h.b16 %v1331
    %v1412 = vunpack.c.l.b16 %v1332
    %v1413 = vunpack.c.h.b16 %v1332
    %v1414 = vunpack.c.l.b16 %v1333
    %v1415 = vunpack.c.h.b16 %v1333
    %v1416 = vunpack.c.l.b16 %v1334
    %v1417 = vunpack.c.h.b16 %v1334
    %v1418 = vunpack.c.l.b16 %v1335
    %v1419 = vunpack.c.h.b16 %v1335
    %v1420 = vunpack.c.l.b16 %v1336
    %v1421 = vunpack.c.h.b16 %v1336
    %v1422 = vunpack.c.l.b16 %v1337
    %v1423 = vunpack.c.h.b16 %v1337
    %v1424 = vunpack.c.l.b16 %v1338
    %v1425 = vunpack.c.h.b16 %v1338
    %v1426 = vunpack.c.l.b16 %v1339
    %v1427 = vunpack.c.h.b16 %v1339
    %v1428 = vunpack.c.l.b16 %v1340
    %v1429 = vunpack.c.h.b16 %v1340
    %v1430 = vunpack.c.l.b16 %v1341
    %v1431 = vunpack.c.h.b16 %v1341
    %v1432 = vunpack.c.l.b16 %v1342
    %v1433 = vunpack.c.h.b16 %v1342
    %v1434 = vunpack.c.l.b16 %v1343
    %v1435 = vunpack.c.h.b16 %v1343
    %v1436 = vunpack.c.l.b16 %v1344
    %v1437 = vunpack.c.h.b16 %v1344
    %v1438 = vunpack.c.l.b16 %v1345
    %v1439 = vunpack.c.h.b16 %v1345
    %v1440 = vunpack.c.l.b16 %v1346
    %v1441 = vunpack.c.h.b16 %v1346
    %v1442 = vunpack.c.l.b16 %v1347
    %v1443 = vunpack.c.h.b16 %v1347
    %v1444 = vunpack.c.l.b16 %v1348
    %v1445 = vunpack.c.h.b16 %v1348
    %v1446 = vunpack.c.l.b16 %v1349
    %v1447 = vunpack.c.h.b16 %v1349
    %v1448 = vunpack.c.l.b16 %v1350
    %v1449 = vunpack.c.h.b16 %v1350
    %v1450 = vunpack.c.l.b16 %v1351
    %v1451 = vunpack.c.h.b16 %v1351
    %v1452 = vunpack.c.l.b16 %v1352
    %v1453 = vunpack.c.h.b16 %v1352
    %v1454 = vunpack.c.l.b16 %v1353
    %v1455 = vunpack.c.h.b16 %v1353
    %v1456 = vunpack.c.l.b16 %v1354
    %v1457 = vunpack.c.h.b16 %v1354
    %v1458 = vunpack.c.l.b16 %v1355
    %v1459 = vunpack.c.h.b16 %v1355
    %v1460 = vunpack.c.l.b16 %v1356
    %v1461 = vunpack.c.h.b16 %v1356
    %v1462 = vunpack.c.l.b16 %v1357
    %v1463 = vunpack.c.h.b16 %v1357
    %v1464 = vunpack.c.l.b16 %v1358
    %v1465 = vunpack.c.h.b16 %v1358
    %v1466 = vpack.c.b16 %v1404, %v1402
    %v1467 = vpack.c.b16 %v1405, %v1403
    %v1468 = vpack.c.b16 %v1408, %v1406
    %v1469 = vpack.c.b16 %v1409, %v1407
    %v1470 = vpack.c.b16 %v1412, %v1410
    %v1471 = vpack.c.b16 %v1413, %v1411
    %v1472 = vpack.c.b16 %v1416, %v1414
    %v1473 = vpack.c.b16 %v1417, %v1415
    %v1474 = vpack.c.b16 %v1420, %v1418
    %v1475 = vpack.c.b16 %v1421, %v1419
    %v1476 = vpack.c.b16 %v1424, %v1422
    %v1477 = vpack.c.b16 %v1425, %v1423
    %v1478 = vpack.c.b16 %v1428, %v1426
    %v1479 = vpack.c.b16 %v1429, %v1427
    %v1480 = vpack.c.b16 %v1432, %v1430
    %v1481 = vpack.c.b16 %v1433, %v1431
    %v1482 = vpack.c.b16 %v1436, %v1434
    %v1483 = vpack.c.b16 %v1437, %v1435
    %v1484 = vpack.c.b16 %v1440, %v1438
    %v1485 = vpack.c.b16 %v1441, %v1439
    %v1486 = vpack.c.b16 %v1444, %v1442
    %v1487 = vpack.c.b16 %v1445, %v1443
    %v1488 = vpack.c.b16 %v1448, %v1446
    %v1489 = vpack.c.b16 %v1449, %v1447
    %v1490 = vpack.c.b16 %v1452, %v1450
    %v1491 = vpack.c.b16 %v1453, %v1451
    %v1492 = vpack.c.b16 %v1456, %v1454
    %v1493 = vpack.c.b16 %v1457, %v1455
    %v1494 = vpack.c.b16 %v1460, %v1458
    %v1495 = vpack.c.b16 %v1461, %v1459
    %v1496 = vpack.c.b16 %v1464, %v1462
    %v1497 = vpack.c.b16 %v1465, %v1463
    %1530 = vmatprep.subr.bf16.mxu0 %v1467
    %1531 = vmatpush1.bf16.msra.mxu0 %v1466
    %1532 = vmatprep.subr.bf16.mxu0 %v1469
    %1533 = vmatpush1.bf16.msra.mxu0 %v1468
    %1534 = vmatprep.subr.bf16.mxu0 %v1471
    %1535 = vmatpush1.bf16.msra.mxu0 %v1470
    %1536 = vmatprep.subr.bf16.mxu0 %v1473
    %1537 = vmatpush1.bf16.msra.mxu0 %v1472
    %1538 = vmatprep.subr.bf16.mxu0 %v1475
    %1539 = vmatpush1.bf16.msra.mxu0 %v1474
    %1540 = vmatprep.subr.bf16.mxu0 %v1477
    %1541 = vmatpush1.bf16.msra.mxu0 %v1476
    %1542 = vmatprep.subr.bf16.mxu0 %v1479
    %1543 = vmatpush1.bf16.msra.mxu0 %v1478
    %1544 = vmatprep.subr.bf16.mxu0 %v1481
    %1545 = vmatpush1.bf16.msra.mxu0 %v1480
    %1546 = vmatprep.subr.bf16.mxu0 %v1483
    %1547 = vmatpush1.bf16.msra.mxu0 %v1482
    %1548 = vmatprep.subr.bf16.mxu0 %v1485
    %1549 = vmatpush1.bf16.msra.mxu0 %v1484
    %1550 = vmatprep.subr.bf16.mxu0 %v1487
    %1551 = vmatpush1.bf16.msra.mxu0 %v1486
    %1552 = vmatprep.subr.bf16.mxu0 %v1489
    %1553 = vmatpush1.bf16.msra.mxu0 %v1488
    %1554 = vmatprep.subr.bf16.mxu0 %v1491
    %1555 = vmatpush1.bf16.msra.mxu0 %v1490
    %1556 = vmatprep.subr.bf16.mxu0 %v1493
    %1557 = vmatpush1.bf16.msra.mxu0 %v1492
    %1558 = vmatprep.subr.bf16.mxu0 %v1495
    %1559 = vmatpush1.bf16.msra.mxu0 %v1494
    %1560 = vmatprep.subr.bf16.mxu0 %v1497
    %1561 = vmatpush1.bf16.msra.mxu0 %v1496
    %1562 = vmatprep.mubr.bf16.mxu0 %v1326
    %1563 = vmatmul.mubr.bf16.gmra.mrb[0].mxu0 %v1325
    %v1564 = vpop.f32.mrb[0].mxu0
    %v1565 = vadd.f32 %v1363, %v1564
    %v1566 = vpop.f32.mrb[0].mxu0
    %v1567 = vadd.f32 %v1367, %v1566
    %v1568 = vpop.f32.mrb[0].mxu0
    %v1569 = vadd.f32 %v1363, %v1568
    %v1570 = vpop.f32.mrb[0].mxu0
    %v1571 = vadd.f32 %v1367, %v1570
    %1572 = vdwg.mxu0
    %v1573 = vmax.f32 %v1565, 0.0
    %v1574 = vmax.f32 %v1567, 0.0
    %v1575 = vmax.f32 %v1569, 0.0
    %v1576 = vmax.f32 %v1571, 0.0
    %v1578 = vlaneseq
    %v1579 = vshrl.u32 %v1578, 7
    %v1580 = vsub.s32 0, %v1579
    %v1581 = vrot.slane %v93, %v1580
    %v1582 = vlaneseq
    %v1583 = vshrl.u32 %v1582, 7
    %v1584 = vsub.s32 1, %v1583
    %v1585 = vrot.slane %v93, %v1584
    %v1588 = vmul.f32 %v1573, %v1581
    %v1589 = vmul.f32 %v1574, %v1585
    %v1590 = vmul.f32 %v1575, %v1581
    %v1591 = vmul.f32 %v1576, %v1585
    %v1592 = vadd.f32 %v1588, %v1589
    %1593 = vadd.xlane.f32.xlu0 %v1592
    %v1594 = vpop.xlane.xlu0 %1593
    %v1595 = vadd.f32 %v1590, %v1591
    %1596 = vadd.xlane.f32.xlu0 %v1595
    %v1597 = vpop.xlane.xlu0 %1596
    %v1599 = vlaneseq
    %v1600 = vshrl.u32 %v1599, 7
    %v1601 = vsub.s32 0, %v1600
    %v1602 = vrot.slane %v92, %v1601
    %v1604 = vadd.f32 %v1594, %v1602
    %v1605 = vadd.f32 %v1597, %v1602
    %vm1606 = vcmask 7168
    %1607 = vst.msk [vmem:[%s9] sm:$0xff] %vm1606, %v1604
    %1608 = vst.msk [vmem:[%s9 + $0x8] sm:$0xff] %vm1606, %v1605
    // Predicated region
    $region54: #{tpu_custom_call.1} parent=1 // pred_check
      _
    $region55: #{tpu_custom_call.1} parent=1 // pred_check_branch
      %1610 = sbr.rel (0) target = $region57
    $region56: #{tpu_custom_call.1} parent=1 // pred_region
      _
    $region57: #{tpu_custom_call.1} parent=1 // pred_fallthru
      _
    // Predicated region
    $region58: #{tpu_custom_call.1} parent=1 // pred_check
      _
    $region59: #{tpu_custom_call.1} parent=1 // pred_check_branch
      %1612 = sbr.rel (0) target = $region61
    $region60: #{tpu_custom_call.1} parent=1 // pred_region
      _
    $region61: #{tpu_custom_call.1} parent=1 // pred_fallthru
      _
    %1613 = vsyncpa [#allocation4], 1
    %1614 = vsyncpa [#allocation6], 1
    %1615 = vsyncpa [#allocation9], 1

</llo_original>
